<compile_context>
chip_gen: v7x
topology: tpu7x:2x2x1
jax: 0.10.0
libtpu: 0.0.40
codegen_flags: <defaults>
</compile_context>

<pallas_src>
import math

import jax
import jax.numpy as jnp
from jax.experimental import pallas as pl
from jax.experimental.pallas import tpu as pltpu


# ------------------------------ fused forward kernel ------------------------------

def make_fused_kernel(B, C, L, num_layer):
    n_layers = 2 * num_layer
    D = L // (2 ** num_layer)
    inv_c = 1.0 / float(C)

    def kernel(*refs):
        x_ref = refs[0]                                  # (B*C, L)
        wb = refs[1:1 + 2 * n_layers]                    # w0, b0, w1, b1, ...
        gaf_ref, lat_ref, rec_ref = refs[1 + 2 * n_layers:]

        # ---- AutoEncoder: unrolled Linear+ReLU stack, everything stays in VMEM ----
        h = x_ref[...]                                   # rows: r = b*C + c
        latent = None
        for li in range(n_layers):
            w = wb[2 * li][...]                          # (in, out) == torch weight.T
            b = wb[2 * li + 1][...]                      # (1, out)
            h = jnp.maximum(
                jnp.dot(h, w, preferred_element_type=jnp.float32) + b, 0.0)
            if li == num_layer - 1:
                latent = h                               # encoder output, (B*C, D)
        recon = h                                        # decoder output, (B*C, L)

        # ---- pyts GramianAngularField (defaults): per-sample min-max rescale to
        # [-1, 1]; method='summation' (GASF):
        #   cos(phi_i + phi_j) = x_i*x_j - sqrt(1-x_i^2)*sqrt(1-x_j^2)
        x_min = jnp.min(latent, axis=-1, keepdims=True)
        x_max = jnp.max(latent, axis=-1, keepdims=True)
        span = x_max - x_min
        # Guard: a constant latent row (e.g. all-zero after ReLU) would divide by 0 in
        # pyts; clamp the denominator so the kernel stays NaN-free (row maps to xs=-1).
        safe_span = jnp.where(span == 0.0, 1.0, span)
        xs = 2.0 * (latent - x_min) / safe_span - 1.0
        ys = jnp.sqrt(jnp.clip(1.0 - xs * xs, 0.0, 1.0))
        gasf = (xs[:, :, None] * xs[:, None, :]
                - ys[:, :, None] * ys[:, None, :])       # (B*C, D, D)

        # ---- channel mean per batch element (rows b*C .. b*C+C-1 belong to batch b);
        # accumulate with unrolled adds and scale by precomputed 1/C (multiply, not divide).
        for b_idx in range(B):
            acc = gasf[b_idx * C]
            for c_idx in range(1, C):
                acc = acc + gasf[b_idx * C + c_idx]
            gaf_ref[b_idx] = acc * inv_c

        lat_ref[...] = latent
        rec_ref[...] = recon                             # lane-dense (B*C, L=128) store

    return kernel, D


def our_model_forward(x, params, num_layer):
    B, C, L = x.shape
    R = B * C
    kernel, D = make_fused_kernel(B, C, L, num_layer)

    # Free row-major collapse of the leading dims (no transpose, no copy): row r = b*C + c.
    rows = x.reshape(R, L)

    inputs = [rows]
    in_specs = [pl.BlockSpec((R, L), lambda i: (0, 0))]
    for w, b in params:
        fi, fo = w.shape
        inputs.append(w)
        in_specs.append(pl.BlockSpec((fi, fo), lambda i: (0, 0)))
        inputs.append(b.reshape(1, fo))
        in_specs.append(pl.BlockSpec((1, fo), lambda i: (0, 0)))

    gaf, latent_rows, recon_rows = pl.pallas_call(
        kernel,
        out_shape=(
            jax.ShapeDtypeStruct((B, D, D), jnp.float32),   # ts_image_mean
            jax.ShapeDtypeStruct((R, D), jnp.float32),      # latent rows
            jax.ShapeDtypeStruct((R, L), jnp.float32),      # recon rows
        ),
        grid=(1,),
        in_specs=in_specs,
        out_specs=(
            pl.BlockSpec((B, D, D), lambda i: (0, 0, 0)),
            pl.BlockSpec((R, D), lambda i: (0, 0)),
            pl.BlockSpec((R, L), lambda i: (0, 0)),
        ),
        compiler_params=pltpu.CompilerParams(dimension_semantics=("arbitrary",)),
    )(*inputs)

    latent = latent_rows.reshape(B, C, D)    # free reshape (split leading dim)
    recon = recon_rows.reshape(B, C, L)
    return gaf, latent, recon


# ---------------------------- parameter init (deterministic) ----------------------

def init_autoencoder_params(key, sequence_length, compress_ratio):
    # replicate AutoEncoder.__init__ layer-size logic
    num_layer = 1
    while compress_ratio // (2 ** num_layer) != 1:
        num_layer += 1
    enc_dims = [(sequence_length // 2 ** i, sequence_length // 2 ** (i + 1))
                for i in range(num_layer)]
    dec_dims = [(sequence_length // 2 ** (num_layer - i),
                 sequence_length // 2 ** (num_layer - i - 1))
                for i in range(num_layer)]
    params = []
    for fan_in, fan_out in enc_dims + dec_dims:
        key, kw, kb = jax.random.split(key, 3)
        bound = 1.0 / math.sqrt(fan_in)   # nn.Linear default U(-1/sqrt(in), 1/sqrt(in))
        w = jax.random.uniform(kw, (fan_in, fan_out), jnp.float32, -bound, bound)
        b = jax.random.uniform(kb, (fan_out,), jnp.float32, -bound, bound)
        params.append((w, b))
    return params, num_layer


# ----------------------------------------- main -----------------------------------

if __name__ == "__main__":
    B, C = 2, 4
    sequence_length = 128
    compress_ratio = 16          # -> 4 encoder + 4 decoder layers, latent D = 8

    key = jax.random.PRNGKey(0)
    kx, kp = jax.random.split(key)
    x = jax.random.normal(kx, (B, C, sequence_length), dtype=jnp.float32)
    params, num_layer = init_autoencoder_params(kp, sequence_length, compress_ratio)

    fwd = jax.jit(lambda xx, pp: our_model_forward(xx, pp, num_layer))
    ts_image_mean, latent, recon = fwd(x, params)
    jax.block_until_ready((ts_image_mean, latent, recon))

    D = sequence_length // compress_ratio
    assert ts_image_mean.shape == (B, D, D)
    assert latent.shape == (B, C, D)
    assert recon.shape == (B, C, sequence_length)
    assert bool(jnp.all(jnp.isfinite(ts_image_mean)))
    print("KERNEL_OK")
</pallas_src>

<mosaic_0001>
module attributes {stable_mosaic.version = 11 : i64} {
  func.func @kernel(%arg0: i32, %arg1: memref<8x128xf32, #tpu.memory_space<vmem>>, %arg2: memref<128x64xf32, #tpu.memory_space<vmem>>, %arg3: memref<1x64xf32, #tpu.memory_space<vmem>>, %arg4: memref<64x32xf32, #tpu.memory_space<vmem>>, %arg5: memref<1x32xf32, #tpu.memory_space<vmem>>, %arg6: memref<32x16xf32, #tpu.memory_space<vmem>>, %arg7: memref<1x16xf32, #tpu.memory_space<vmem>>, %arg8: memref<16x8xf32, #tpu.memory_space<vmem>>, %arg9: memref<1x8xf32, #tpu.memory_space<vmem>>, %arg10: memref<8x16xf32, #tpu.memory_space<vmem>>, %arg11: memref<1x16xf32, #tpu.memory_space<vmem>>, %arg12: memref<16x32xf32, #tpu.memory_space<vmem>>, %arg13: memref<1x32xf32, #tpu.memory_space<vmem>>, %arg14: memref<32x64xf32, #tpu.memory_space<vmem>>, %arg15: memref<1x64xf32, #tpu.memory_space<vmem>>, %arg16: memref<64x128xf32, #tpu.memory_space<vmem>>, %arg17: memref<1x128xf32, #tpu.memory_space<vmem>>, %arg18: memref<2x8x8xf32, #tpu.memory_space<vmem>>, %arg19: memref<8x8xf32, #tpu.memory_space<vmem>>, %arg20: memref<8x128xf32, #tpu.memory_space<vmem>>) attributes {dimension_semantics = [#tpu.dimension_semantics<arbitrary>], iteration_bounds = array<i64: 1>, scalar_prefetch = 0 : i64, scratch_operands = 0 : i64, tpu.core_type = #tpu.core_type<tc>, window_params = [{pipeline_mode = #tpu.pipeline_mode<synchronous>, transform_indices = @transform_0, window_bounds = array<i64: 8, 128>}, {pipeline_mode = #tpu.pipeline_mode<synchronous>, transform_indices = @transform_1, window_bounds = array<i64: 128, 64>}, {pipeline_mode = #tpu.pipeline_mode<synchronous>, transform_indices = @transform_2, window_bounds = array<i64: 1, 64>}, {pipeline_mode = #tpu.pipeline_mode<synchronous>, transform_indices = @transform_3, window_bounds = array<i64: 64, 32>}, {pipeline_mode = #tpu.pipeline_mode<synchronous>, transform_indices = @transform_4, window_bounds = array<i64: 1, 32>}, {pipeline_mode = #tpu.pipeline_mode<synchronous>, transform_indices = @transform_5, window_bounds = array<i64: 32, 16>}, {pipeline_mode = #tpu.pipeline_mode<synchronous>, transform_indices = @transform_6, window_bounds = array<i64: 1, 16>}, {pipeline_mode = #tpu.pipeline_mode<synchronous>, transform_indices = @transform_7, window_bounds = array<i64: 16, 8>}, {pipeline_mode = #tpu.pipeline_mode<synchronous>, transform_indices = @transform_8, window_bounds = array<i64: 1, 8>}, {pipeline_mode = #tpu.pipeline_mode<synchronous>, transform_indices = @transform_9, window_bounds = array<i64: 8, 16>}, {pipeline_mode = #tpu.pipeline_mode<synchronous>, transform_indices = @transform_10, window_bounds = array<i64: 1, 16>}, {pipeline_mode = #tpu.pipeline_mode<synchronous>, transform_indices = @transform_11, window_bounds = array<i64: 16, 32>}, {pipeline_mode = #tpu.pipeline_mode<synchronous>, transform_indices = @transform_12, window_bounds = array<i64: 1, 32>}, {pipeline_mode = #tpu.pipeline_mode<synchronous>, transform_indices = @transform_13, window_bounds = array<i64: 32, 64>}, {pipeline_mode = #tpu.pipeline_mode<synchronous>, transform_indices = @transform_14, window_bounds = array<i64: 1, 64>}, {pipeline_mode = #tpu.pipeline_mode<synchronous>, transform_indices = @transform_15, window_bounds = array<i64: 64, 128>}, {pipeline_mode = #tpu.pipeline_mode<synchronous>, transform_indices = @transform_16, window_bounds = array<i64: 1, 128>}, {pipeline_mode = #tpu.pipeline_mode<synchronous>, transform_indices = @transform_17, window_bounds = array<i64: 2, 8, 8>}, {pipeline_mode = #tpu.pipeline_mode<synchronous>, transform_indices = @transform_18, window_bounds = array<i64: 8, 8>}, {pipeline_mode = #tpu.pipeline_mode<synchronous>, transform_indices = @transform_19, window_bounds = array<i64: 8, 128>}]} {
    %c0 = arith.constant 0 : index
    %c0_0 = arith.constant 0 : index
    %0 = vector.load %arg1[%c0, %c0_0] : memref<8x128xf32, #tpu.memory_space<vmem>>, vector<8x128xf32>
    %c0_1 = arith.constant 0 : index
    %c0_2 = arith.constant 0 : index
    %1 = vector.load %arg2[%c0_1, %c0_2] : memref<128x64xf32, #tpu.memory_space<vmem>>, vector<128x64xf32>
    %c0_3 = arith.constant 0 : index
    %c0_4 = arith.constant 0 : index
    %2 = vector.load %arg3[%c0_3, %c0_4] : memref<1x64xf32, #tpu.memory_space<vmem>>, vector<1x64xf32>
    %cst = arith.constant dense<0.000000e+00> : vector<8x64xf32>
    %3 = tpu.matmul %0, %1, %cst {dimension_numbers = #tpu.dot_dimension_numbers<[1], [0], [0], [1], [0, 0, 1, 1], [], []>} : vector<8x128xf32>, vector<128x64xf32>, vector<8x64xf32> -> vector<8x64xf32>
    %4 = vector.broadcast %2 : vector<1x64xf32> to vector<8x64xf32>
    %5 = arith.addf %3, %4 : vector<8x64xf32>
    %cst_5 = arith.constant 0.000000e+00 : f32
    %6 = vector.broadcast %cst_5 : f32 to vector<8x64xf32>
    %7 = arith.maximumf %5, %6 : vector<8x64xf32>
    %c0_6 = arith.constant 0 : index
    %c0_7 = arith.constant 0 : index
    %8 = vector.load %arg4[%c0_6, %c0_7] : memref<64x32xf32, #tpu.memory_space<vmem>>, vector<64x32xf32>
    %c0_8 = arith.constant 0 : index
    %c0_9 = arith.constant 0 : index
    %9 = vector.load %arg5[%c0_8, %c0_9] : memref<1x32xf32, #tpu.memory_space<vmem>>, vector<1x32xf32>
    %cst_10 = arith.constant dense<0.000000e+00> : vector<8x32xf32>
    %10 = tpu.matmul %7, %8, %cst_10 {dimension_numbers = #tpu.dot_dimension_numbers<[1], [0], [0], [1], [0, 0, 1, 1], [], []>} : vector<8x64xf32>, vector<64x32xf32>, vector<8x32xf32> -> vector<8x32xf32>
    %11 = vector.broadcast %9 : vector<1x32xf32> to vector<8x32xf32>
    %12 = arith.addf %10, %11 : vector<8x32xf32>
    %cst_11 = arith.constant 0.000000e+00 : f32
    %13 = vector.broadcast %cst_11 : f32 to vector<8x32xf32>
    %14 = arith.maximumf %12, %13 : vector<8x32xf32>
    %c0_12 = arith.constant 0 : index
    %c0_13 = arith.constant 0 : index
    %15 = vector.load %arg6[%c0_12, %c0_13] : memref<32x16xf32, #tpu.memory_space<vmem>>, vector<32x16xf32>
    %c0_14 = arith.constant 0 : index
    %c0_15 = arith.constant 0 : index
    %16 = vector.load %arg7[%c0_14, %c0_15] : memref<1x16xf32, #tpu.memory_space<vmem>>, vector<1x16xf32>
    %cst_16 = arith.constant dense<0.000000e+00> : vector<8x16xf32>
    %17 = tpu.matmul %14, %15, %cst_16 {dimension_numbers = #tpu.dot_dimension_numbers<[1], [0], [0], [1], [0, 0, 1, 1], [], []>} : vector<8x32xf32>, vector<32x16xf32>, vector<8x16xf32> -> vector<8x16xf32>
    %18 = vector.broadcast %16 : vector<1x16xf32> to vector<8x16xf32>
    %19 = arith.addf %17, %18 : vector<8x16xf32>
    %cst_17 = arith.constant 0.000000e+00 : f32
    %20 = vector.broadcast %cst_17 : f32 to vector<8x16xf32>
    %21 = arith.maximumf %19, %20 : vector<8x16xf32>
    %c0_18 = arith.constant 0 : index
    %c0_19 = arith.constant 0 : index
    %22 = vector.load %arg8[%c0_18, %c0_19] : memref<16x8xf32, #tpu.memory_space<vmem>>, vector<16x8xf32>
    %c0_20 = arith.constant 0 : index
    %c0_21 = arith.constant 0 : index
    %23 = vector.load %arg9[%c0_20, %c0_21] : memref<1x8xf32, #tpu.memory_space<vmem>>, vector<1x8xf32>
    %cst_22 = arith.constant dense<0.000000e+00> : vector<8x8xf32>
    %24 = tpu.matmul %21, %22, %cst_22 {dimension_numbers = #tpu.dot_dimension_numbers<[1], [0], [0], [1], [0, 0, 1, 1], [], []>} : vector<8x16xf32>, vector<16x8xf32>, vector<8x8xf32> -> vector<8x8xf32>
    %25 = vector.broadcast %23 : vector<1x8xf32> to vector<8x8xf32>
    %26 = arith.addf %24, %25 : vector<8x8xf32>
    %cst_23 = arith.constant 0.000000e+00 : f32
    %27 = vector.broadcast %cst_23 : f32 to vector<8x8xf32>
    %28 = arith.maximumf %26, %27 : vector<8x8xf32>
    %c0_24 = arith.constant 0 : index
    %c0_25 = arith.constant 0 : index
    %29 = vector.load %arg10[%c0_24, %c0_25] : memref<8x16xf32, #tpu.memory_space<vmem>>, vector<8x16xf32>
    %c0_26 = arith.constant 0 : index
    %c0_27 = arith.constant 0 : index
    %30 = vector.load %arg11[%c0_26, %c0_27] : memref<1x16xf32, #tpu.memory_space<vmem>>, vector<1x16xf32>
    %cst_28 = arith.constant dense<0.000000e+00> : vector<8x16xf32>
    %31 = tpu.matmul %28, %29, %cst_28 {dimension_numbers = #tpu.dot_dimension_numbers<[1], [0], [0], [1], [0, 0, 1, 1], [], []>} : vector<8x8xf32>, vector<8x16xf32>, vector<8x16xf32> -> vector<8x16xf32>
    %32 = vector.broadcast %30 : vector<1x16xf32> to vector<8x16xf32>
    %33 = arith.addf %31, %32 : vector<8x16xf32>
    %cst_29 = arith.constant 0.000000e+00 : f32
    %34 = vector.broadcast %cst_29 : f32 to vector<8x16xf32>
    %35 = arith.maximumf %33, %34 : vector<8x16xf32>
    %c0_30 = arith.constant 0 : index
    %c0_31 = arith.constant 0 : index
    %36 = vector.load %arg12[%c0_30, %c0_31] : memref<16x32xf32, #tpu.memory_space<vmem>>, vector<16x32xf32>
    %c0_32 = arith.constant 0 : index
    %c0_33 = arith.constant 0 : index
    %37 = vector.load %arg13[%c0_32, %c0_33] : memref<1x32xf32, #tpu.memory_space<vmem>>, vector<1x32xf32>
    %cst_34 = arith.constant dense<0.000000e+00> : vector<8x32xf32>
    %38 = tpu.matmul %35, %36, %cst_34 {dimension_numbers = #tpu.dot_dimension_numbers<[1], [0], [0], [1], [0, 0, 1, 1], [], []>} : vector<8x16xf32>, vector<16x32xf32>, vector<8x32xf32> -> vector<8x32xf32>
    %39 = vector.broadcast %37 : vector<1x32xf32> to vector<8x32xf32>
    %40 = arith.addf %38, %39 : vector<8x32xf32>
    %cst_35 = arith.constant 0.000000e+00 : f32
    %41 = vector.broadcast %cst_35 : f32 to vector<8x32xf32>
    %42 = arith.maximumf %40, %41 : vector<8x32xf32>
    %c0_36 = arith.constant 0 : index
    %c0_37 = arith.constant 0 : index
    %43 = vector.load %arg14[%c0_36, %c0_37] : memref<32x64xf32, #tpu.memory_space<vmem>>, vector<32x64xf32>
    %c0_38 = arith.constant 0 : index
    %c0_39 = arith.constant 0 : index
    %44 = vector.load %arg15[%c0_38, %c0_39] : memref<1x64xf32, #tpu.memory_space<vmem>>, vector<1x64xf32>
    %cst_40 = arith.constant dense<0.000000e+00> : vector<8x64xf32>
    %45 = tpu.matmul %42, %43, %cst_40 {dimension_numbers = #tpu.dot_dimension_numbers<[1], [0], [0], [1], [0, 0, 1, 1], [], []>} : vector<8x32xf32>, vector<32x64xf32>, vector<8x64xf32> -> vector<8x64xf32>
    %46 = vector.broadcast %44 : vector<1x64xf32> to vector<8x64xf32>
    %47 = arith.addf %45, %46 : vector<8x64xf32>
    %cst_41 = arith.constant 0.000000e+00 : f32
    %48 = vector.broadcast %cst_41 : f32 to vector<8x64xf32>
    %49 = arith.maximumf %47, %48 : vector<8x64xf32>
    %c0_42 = arith.constant 0 : index
    %c0_43 = arith.constant 0 : index
    %50 = vector.load %arg16[%c0_42, %c0_43] : memref<64x128xf32, #tpu.memory_space<vmem>>, vector<64x128xf32>
    %c0_44 = arith.constant 0 : index
    %c0_45 = arith.constant 0 : index
    %51 = vector.load %arg17[%c0_44, %c0_45] : memref<1x128xf32, #tpu.memory_space<vmem>>, vector<1x128xf32>
    %cst_46 = arith.constant dense<0.000000e+00> : vector<8x128xf32>
    %52 = tpu.matmul %49, %50, %cst_46 {dimension_numbers = #tpu.dot_dimension_numbers<[1], [0], [0], [1], [0, 0, 1, 1], [], []>} : vector<8x64xf32>, vector<64x128xf32>, vector<8x128xf32> -> vector<8x128xf32>
    %53 = vector.broadcast %51 : vector<1x128xf32> to vector<8x128xf32>
    %54 = arith.addf %52, %53 : vector<8x128xf32>
    %cst_47 = arith.constant 0.000000e+00 : f32
    %55 = vector.broadcast %cst_47 : f32 to vector<8x128xf32>
    %56 = arith.maximumf %54, %55 : vector<8x128xf32>
    %cst_48 = arith.constant dense<0x7F800000> : vector<8xf32>
    %57 = vector.multi_reduction <minimumf>, %28, %cst_48 [1] : vector<8x8xf32> to vector<8xf32>
    %58 = vector.shape_cast %57 : vector<8xf32> to vector<8x1xf32>
    %cst_49 = arith.constant dense<0xFF800000> : vector<8xf32>
    %59 = vector.multi_reduction <maximumf>, %28, %cst_49 [1] : vector<8x8xf32> to vector<8xf32>
    %60 = vector.shape_cast %59 : vector<8xf32> to vector<8x1xf32>
    %61 = arith.subf %60, %58 : vector<8x1xf32>
    %cst_50 = arith.constant 0.000000e+00 : f32
    %62 = vector.broadcast %cst_50 : f32 to vector<8x1xf32>
    %63 = arith.cmpf oeq, %61, %62 : vector<8x1xf32>
    %cst_51 = arith.constant 1.000000e+00 : f32
    %64 = vector.broadcast %cst_51 : f32 to vector<8x1xf32>
    %65 = arith.select %63, %64, %61 : vector<8x1xi1>, vector<8x1xf32>
    %66 = vector.broadcast %58 : vector<8x1xf32> to vector<8x8xf32>
    %67 = arith.subf %28, %66 : vector<8x8xf32>
    %cst_52 = arith.constant 2.000000e+00 : f32
    %68 = vector.broadcast %cst_52 : f32 to vector<8x8xf32>
    %69 = arith.mulf %68, %67 : vector<8x8xf32>
    %70 = vector.broadcast %65 : vector<8x1xf32> to vector<8x8xf32>
    %71 = arith.divf %69, %70 : vector<8x8xf32>
    %cst_53 = arith.constant 1.000000e+00 : f32
    %72 = vector.broadcast %cst_53 : f32 to vector<8x8xf32>
    %73 = arith.subf %71, %72 : vector<8x8xf32>
    %74 = arith.mulf %73, %73 : vector<8x8xf32>
    %cst_54 = arith.constant 1.000000e+00 : f32
    %75 = vector.broadcast %cst_54 : f32 to vector<8x8xf32>
    %76 = arith.subf %75, %74 : vector<8x8xf32>
    %cst_55 = arith.constant 0.000000e+00 : f32
    %cst_56 = arith.constant 1.000000e+00 : f32
    %77 = vector.broadcast %cst_55 : f32 to vector<8x8xf32>
    %78 = arith.maximumf %77, %76 : vector<8x8xf32>
    %79 = vector.broadcast %cst_56 : f32 to vector<8x8xf32>
    %80 = arith.minimumf %79, %78 : vector<8x8xf32>
    %81 = math.sqrt %80 : vector<8x8xf32>
    %82 = vector.shape_cast %73 : vector<8x8xf32> to vector<8x8x1xf32>
    %83 = vector.shape_cast %73 : vector<8x8xf32> to vector<8x1x8xf32>
    %84 = vector.broadcast %82 : vector<8x8x1xf32> to vector<8x8x8xf32>
    %85 = vector.broadcast %83 : vector<8x1x8xf32> to vector<8x8x8xf32>
    %86 = arith.mulf %84, %85 : vector<8x8x8xf32>
    %87 = vector.shape_cast %81 : vector<8x8xf32> to vector<8x8x1xf32>
    %88 = vector.shape_cast %81 : vector<8x8xf32> to vector<8x1x8xf32>
    %89 = vector.broadcast %87 : vector<8x8x1xf32> to vector<8x8x8xf32>
    %90 = vector.broadcast %88 : vector<8x1x8xf32> to vector<8x8x8xf32>
    %91 = arith.mulf %89, %90 : vector<8x8x8xf32>
    %92 = arith.subf %86, %91 : vector<8x8x8xf32>
    %93 = vector.extract_strided_slice %92 {offsets = [0, 0, 0], sizes = [1, 8, 8], strides = [1, 1, 1]} : vector<8x8x8xf32> to vector<1x8x8xf32>
    %94 = vector.shape_cast %93 : vector<1x8x8xf32> to vector<8x8xf32>
    %95 = vector.extract_strided_slice %92 {offsets = [1, 0, 0], sizes = [1, 8, 8], strides = [1, 1, 1]} : vector<8x8x8xf32> to vector<1x8x8xf32>
    %96 = vector.shape_cast %95 : vector<1x8x8xf32> to vector<8x8xf32>
    %97 = arith.addf %94, %96 : vector<8x8xf32>
    %98 = vector.extract_strided_slice %92 {offsets = [2, 0, 0], sizes = [1, 8, 8], strides = [1, 1, 1]} : vector<8x8x8xf32> to vector<1x8x8xf32>
    %99 = vector.shape_cast %98 : vector<1x8x8xf32> to vector<8x8xf32>
    %100 = arith.addf %97, %99 : vector<8x8xf32>
    %101 = vector.extract_strided_slice %92 {offsets = [3, 0, 0], sizes = [1, 8, 8], strides = [1, 1, 1]} : vector<8x8x8xf32> to vector<1x8x8xf32>
    %102 = vector.shape_cast %101 : vector<1x8x8xf32> to vector<8x8xf32>
    %103 = arith.addf %100, %102 : vector<8x8xf32>
    %cst_57 = arith.constant 2.500000e-01 : f32
    %104 = vector.broadcast %cst_57 : f32 to vector<8x8xf32>
    %105 = arith.mulf %103, %104 : vector<8x8xf32>
    %c0_58 = arith.constant 0 : index
    %c0_59 = arith.constant 0 : index
    %c0_60 = arith.constant 0 : index
    %106 = vector.load %arg18[%c0_58, %c0_59, %c0_60] : memref<2x8x8xf32, #tpu.memory_space<vmem>>, vector<1x8x8xf32>
    %107 = vector.shape_cast %106 : vector<1x8x8xf32> to vector<8x8xf32>
    %108 = vector.shape_cast %105 : vector<8x8xf32> to vector<1x8x8xf32>
    tpu.vector_store %arg18[%c0_58, %c0_59, %c0_60], %108 {strides = array<i32>} : memref<2x8x8xf32, #tpu.memory_space<vmem>>, vector<1x8x8xf32>,
    %109 = vector.extract_strided_slice %92 {offsets = [4, 0, 0], sizes = [1, 8, 8], strides = [1, 1, 1]} : vector<8x8x8xf32> to vector<1x8x8xf32>
    %110 = vector.shape_cast %109 : vector<1x8x8xf32> to vector<8x8xf32>
    %111 = vector.extract_strided_slice %92 {offsets = [5, 0, 0], sizes = [1, 8, 8], strides = [1, 1, 1]} : vector<8x8x8xf32> to vector<1x8x8xf32>
    %112 = vector.shape_cast %111 : vector<1x8x8xf32> to vector<8x8xf32>
    %113 = arith.addf %110, %112 : vector<8x8xf32>
    %114 = vector.extract_strided_slice %92 {offsets = [6, 0, 0], sizes = [1, 8, 8], strides = [1, 1, 1]} : vector<8x8x8xf32> to vector<1x8x8xf32>
    %115 = vector.shape_cast %114 : vector<1x8x8xf32> to vector<8x8xf32>
    %116 = arith.addf %113, %115 : vector<8x8xf32>
    %117 = vector.extract_strided_slice %92 {offsets = [7, 0, 0], sizes = [1, 8, 8], strides = [1, 1, 1]} : vector<8x8x8xf32> to vector<1x8x8xf32>
    %118 = vector.shape_cast %117 : vector<1x8x8xf32> to vector<8x8xf32>
    %119 = arith.addf %116, %118 : vector<8x8xf32>
    %cst_61 = arith.constant 2.500000e-01 : f32
    %120 = vector.broadcast %cst_61 : f32 to vector<8x8xf32>
    %121 = arith.mulf %119, %120 : vector<8x8xf32>
    %c1 = arith.constant 1 : index
    %c0_62 = arith.constant 0 : index
    %c0_63 = arith.constant 0 : index
    %122 = vector.load %arg18[%c1, %c0_62, %c0_63] : memref<2x8x8xf32, #tpu.memory_space<vmem>>, vector<1x8x8xf32>
    %123 = vector.shape_cast %122 : vector<1x8x8xf32> to vector<8x8xf32>
    %124 = vector.shape_cast %121 : vector<8x8xf32> to vector<1x8x8xf32>
    tpu.vector_store %arg18[%c1, %c0_62, %c0_63], %124 {strides = array<i32>} : memref<2x8x8xf32, #tpu.memory_space<vmem>>, vector<1x8x8xf32>,
    %c0_64 = arith.constant 0 : index
    %c0_65 = arith.constant 0 : index
    %125 = vector.load %arg19[%c0_64, %c0_65] : memref<8x8xf32, #tpu.memory_space<vmem>>, vector<8x8xf32>
    tpu.vector_store %arg19[%c0_64, %c0_65], %28 {strides = array<i32>} : memref<8x8xf32, #tpu.memory_space<vmem>>, vector<8x8xf32>,
    %c0_66 = arith.constant 0 : index
    %c0_67 = arith.constant 0 : index
    %126 = vector.load %arg20[%c0_66, %c0_67] : memref<8x128xf32, #tpu.memory_space<vmem>>, vector<8x128xf32>
    tpu.vector_store %arg20[%c0_66, %c0_67], %56 {strides = array<i32>} : memref<8x128xf32, #tpu.memory_space<vmem>>, vector<8x128xf32>,
    return
  }
  func.func @transform_0(%arg0: i32) -> (i32, i32) {
    %c0_i32 = arith.constant 0 : i32
    %c0_i32_0 = arith.constant 0 : i32
    %c0_i32_1 = arith.constant 0 : i32
    return %c0_i32, %c0_i32_0 : i32, i32
  }
  func.func @transform_1(%arg0: i32) -> (i32, i32) {
    %c0_i32 = arith.constant 0 : i32
    %c0_i32_0 = arith.constant 0 : i32
    %c0_i32_1 = arith.constant 0 : i32
    return %c0_i32, %c0_i32_0 : i32, i32
  }
  func.func @transform_2(%arg0: i32) -> (i32, i32) {
    %c0_i32 = arith.constant 0 : i32
    %c0_i32_0 = arith.constant 0 : i32
    %c0_i32_1 = arith.constant 0 : i32
    return %c0_i32, %c0_i32_0 : i32, i32
  }
  func.func @transform_3(%arg0: i32) -> (i32, i32) {
    %c0_i32 = arith.constant 0 : i32
    %c0_i32_0 = arith.constant 0 : i32
    %c0_i32_1 = arith.constant 0 : i32
    return %c0_i32, %c0_i32_0 : i32, i32
  }
  func.func @transform_4(%arg0: i32) -> (i32, i32) {
    %c0_i32 = arith.constant 0 : i32
    %c0_i32_0 = arith.constant 0 : i32
    %c0_i32_1 = arith.constant 0 : i32
    return %c0_i32, %c0_i32_0 : i32, i32
  }
  func.func @transform_5(%arg0: i32) -> (i32, i32) {
    %c0_i32 = arith.constant 0 : i32
    %c0_i32_0 = arith.constant 0 : i32
    %c0_i32_1 = arith.constant 0 : i32
    return %c0_i32, %c0_i32_0 : i32, i32
  }
  func.func @transform_6(%arg0: i32) -> (i32, i32) {
    %c0_i32 = arith.constant 0 : i32
    %c0_i32_0 = arith.constant 0 : i32
    %c0_i32_1 = arith.constant 0 : i32
    return %c0_i32, %c0_i32_0 : i32, i32
  }
  func.func @transform_7(%arg0: i32) -> (i32, i32) {
    %c0_i32 = arith.constant 0 : i32
    %c0_i32_0 = arith.constant 0 : i32
    %c0_i32_1 = arith.constant 0 : i32
    return %c0_i32, %c0_i32_0 : i32, i32
  }
  func.func @transform_8(%arg0: i32) -> (i32, i32) {
    %c0_i32 = arith.constant 0 : i32
    %c0_i32_0 = arith.constant 0 : i32
    %c0_i32_1 = arith.constant 0 : i32
    return %c0_i32, %c0_i32_0 : i32, i32
  }
  func.func @transform_9(%arg0: i32) -> (i32, i32) {
    %c0_i32 = arith.constant 0 : i32
    %c0_i32_0 = arith.constant 0 : i32
    %c0_i32_1 = arith.constant 0 : i32
    return %c0_i32, %c0_i32_0 : i32, i32
  }
  func.func @transform_10(%arg0: i32) -> (i32, i32) {
    %c0_i32 = arith.constant 0 : i32
    %c0_i32_0 = arith.constant 0 : i32
    %c0_i32_1 = arith.constant 0 : i32
    return %c0_i32, %c0_i32_0 : i32, i32
  }
  func.func @transform_11(%arg0: i32) -> (i32, i32) {
    %c0_i32 = arith.constant 0 : i32
    %c0_i32_0 = arith.constant 0 : i32
    %c0_i32_1 = arith.constant 0 : i32
    return %c0_i32, %c0_i32_0 : i32, i32
  }
  func.func @transform_12(%arg0: i32) -> (i32, i32) {
    %c0_i32 = arith.constant 0 : i32
    %c0_i32_0 = arith.constant 0 : i32
    %c0_i32_1 = arith.constant 0 : i32
    return %c0_i32, %c0_i32_0 : i32, i32
  }
  func.func @transform_13(%arg0: i32) -> (i32, i32) {
    %c0_i32 = arith.constant 0 : i32
    %c0_i32_0 = arith.constant 0 : i32
    %c0_i32_1 = arith.constant 0 : i32
    return %c0_i32, %c0_i32_0 : i32, i32
  }
  func.func @transform_14(%arg0: i32) -> (i32, i32) {
    %c0_i32 = arith.constant 0 : i32
    %c0_i32_0 = arith.constant 0 : i32
    %c0_i32_1 = arith.constant 0 : i32
    return %c0_i32, %c0_i32_0 : i32, i32
  }
  func.func @transform_15(%arg0: i32) -> (i32, i32) {
    %c0_i32 = arith.constant 0 : i32
    %c0_i32_0 = arith.constant 0 : i32
    %c0_i32_1 = arith.constant 0 : i32
    return %c0_i32, %c0_i32_0 : i32, i32
  }
  func.func @transform_16(%arg0: i32) -> (i32, i32) {
    %c0_i32 = arith.constant 0 : i32
    %c0_i32_0 = arith.constant 0 : i32
    %c0_i32_1 = arith.constant 0 : i32
    return %c0_i32, %c0_i32_0 : i32, i32
  }
  func.func @transform_17(%arg0: i32) -> (i32, i32, i32) {
    %c0_i32 = arith.constant 0 : i32
    %c0_i32_0 = arith.constant 0 : i32
    %c0_i32_1 = arith.constant 0 : i32
    %c0_i32_2 = arith.constant 0 : i32
    return %c0_i32, %c0_i32_0, %c0_i32_1 : i32, i32, i32
  }
  func.func @transform_18(%arg0: i32) -> (i32, i32) {
    %c0_i32 = arith.constant 0 : i32
    %c0_i32_0 = arith.constant 0 : i32
    %c0_i32_1 = arith.constant 0 : i32
    return %c0_i32, %c0_i32_0 : i32, i32
  }
  func.func @transform_19(%arg0: i32) -> (i32, i32) {
    %c0_i32 = arith.constant 0 : i32
    %c0_i32_0 = arith.constant 0 : i32
    %c0_i32_1 = arith.constant 0 : i32
    return %c0_i32, %c0_i32_0 : i32, i32
  }
}

</mosaic_0001>

<llo_original>
// kernel: _lambda_.1
$region0: #{_lambda_.1}
  #allocation0 [shape = 'u32[]', space=smem, size = 0x4, offset = 0x4, fixed_abs, tag = 'smem constant byte address 0x4 - core index']
  #allocation1 [shape = 'u32[144,128]{1,0:T(1,128)}', space=vmem, size = 0x12000, scoped, tag = 'internal scratch']
  %s0 = inlined_call_operand.vmem [shape: f32[8,128], index: 0, kind: input, shape index: {}]
  %s1 = inlined_call_operand.vmem [shape: f32[128,64], index: 1, kind: input, shape index: {}]
  %s2 = inlined_call_operand.vmem [shape: f32[1,64], index: 2, kind: input, shape index: {}]
  %s3 = inlined_call_operand.vmem [shape: f32[64,32], index: 3, kind: input, shape index: {}]
  %s4 = inlined_call_operand.vmem [shape: f32[1,32], index: 4, kind: input, shape index: {}]
  %s5 = inlined_call_operand.vmem [shape: f32[32,16], index: 5, kind: input, shape index: {}]
  %s6 = inlined_call_operand.vmem [shape: f32[1,16], index: 6, kind: input, shape index: {}]
  %s7 = inlined_call_operand.vmem [shape: f32[16,8], index: 7, kind: input, shape index: {}]
  %s8 = inlined_call_operand.vmem [shape: f32[1,8], index: 8, kind: input, shape index: {}]
  %s9 = inlined_call_operand.vmem [shape: f32[8,16], index: 9, kind: input, shape index: {}]
  %s10 = inlined_call_operand.vmem [shape: f32[1,16], index: 10, kind: input, shape index: {}]
  %s11 = inlined_call_operand.vmem [shape: f32[16,32], index: 11, kind: input, shape index: {}]
  %s12 = inlined_call_operand.vmem [shape: f32[1,32], index: 12, kind: input, shape index: {}]
  %s13 = inlined_call_operand.vmem [shape: f32[32,64], index: 13, kind: input, shape index: {}]
  %s14 = inlined_call_operand.vmem [shape: f32[1,64], index: 14, kind: input, shape index: {}]
  %s15 = inlined_call_operand.vmem [shape: f32[64,128], index: 15, kind: input, shape index: {}]
  %s16 = inlined_call_operand.vmem [shape: f32[1,128], index: 16, kind: input, shape index: {}]
  %s17 = inlined_call_operand.hbm [shape: f32[2,8,8], index: 17, kind: output, shape index: {0}]
  %s18 = inlined_call_operand.hbm [shape: f32[8,8], index: 18, kind: output, shape index: {1}]
  %s19 = inlined_call_operand.hbm [shape: f32[8,128], index: 19, kind: output, shape index: {2}]
  %20 = xla_tuple %s17, %s18, %s19
  %s21 = sld [smem:[#allocation0]]
  $region94: #{_lambda_.1} parent=0
    _
  %s23 = ssub.s32 1, %s21
  %s24 = scalar_select 0, %s23, %s21
  $region1: #{_lambda_.1} parent=0
    #allocation2 [shape = 'u8[8192]{0}', space=vmem, size = 0x2000, scoped, tag = 'output window, operand 0, single buffered']
    #allocation3 [shape = 's32[1]{0}', space=sflag, size = 0x4, scoped, tag = 'scoped memory for _lambda_.1']
    #allocation4 [shape = 'u8[4096]{0}', space=vmem, size = 0x1000, scoped, tag = 'output window, operand 1, single buffered']
    #allocation5 [shape = 's32[1]{0}', space=sflag, size = 0x4, scoped, tag = 'scoped memory for _lambda_.1']
    #allocation6 [shape = 'u8[4096]{0}', space=vmem, size = 0x1000, scoped, tag = 'output window, operand 2, single buffered']
    %25 = vsyncpa [#allocation3], 0
    %26 = vsyncpa [#allocation5], 0
    // Predicated region
    $region2: #{_lambda_.1} parent=1 // pred_check
      _
    $region3: #{_lambda_.1} parent=1 // pred_check_branch
      %28 = sbr.rel (0) target = $region5
    $region4: #{_lambda_.1} parent=1 // pred_region
      _
    $region5: #{_lambda_.1} parent=1 // pred_fallthru
      _
    // Predicated region
    $region6: #{_lambda_.1} parent=1 // pred_check
      _
    $region7: #{_lambda_.1} parent=1 // pred_check_branch
      %30 = sbr.rel (0) target = $region9
    $region8: #{_lambda_.1} parent=1 // pred_region
      _
    $region9: #{_lambda_.1} parent=1 // pred_fallthru
      _
    // Predicated region
    $region10: #{_lambda_.1} parent=1 // pred_check
      _
    $region11: #{_lambda_.1} parent=1 // pred_check_branch
      %32 = sbr.rel (0) target = $region13
    $region12: #{_lambda_.1} parent=1 // pred_region
      _
    $region13: #{_lambda_.1} parent=1 // pred_fallthru
      _
    // Predicated region
    $region14: #{_lambda_.1} parent=1 // pred_check
      _
    $region15: #{_lambda_.1} parent=1 // pred_check_branch
      %34 = sbr.rel (0) target = $region17
    $region16: #{_lambda_.1} parent=1 // pred_region
      _
    $region17: #{_lambda_.1} parent=1 // pred_fallthru
      _
    // Predicated region
    $region18: #{_lambda_.1} parent=1 // pred_check
      _
    $region19: #{_lambda_.1} parent=1 // pred_check_branch
      %36 = sbr.rel (0) target = $region21
    $region20: #{_lambda_.1} parent=1 // pred_region
      _
    $region21: #{_lambda_.1} parent=1 // pred_fallthru
      _
    // Predicated region
    $region22: #{_lambda_.1} parent=1 // pred_check
      _
    $region23: #{_lambda_.1} parent=1 // pred_check_branch
      %38 = sbr.rel (0) target = $region25
    $region24: #{_lambda_.1} parent=1 // pred_region
      _
    $region25: #{_lambda_.1} parent=1 // pred_fallthru
      _
    // Predicated region
    $region26: #{_lambda_.1} parent=1 // pred_check
      _
    $region27: #{_lambda_.1} parent=1 // pred_check_branch
      %40 = sbr.rel (0) target = $region29
    $region28: #{_lambda_.1} parent=1 // pred_region
      _
    $region29: #{_lambda_.1} parent=1 // pred_fallthru
      _
    // Predicated region
    $region30: #{_lambda_.1} parent=1 // pred_check
      _
    $region31: #{_lambda_.1} parent=1 // pred_check_branch
      %42 = sbr.rel (0) target = $region33
    $region32: #{_lambda_.1} parent=1 // pred_region
      _
    $region33: #{_lambda_.1} parent=1 // pred_fallthru
      _
    // Predicated region
    $region34: #{_lambda_.1} parent=1 // pred_check
      _
    $region35: #{_lambda_.1} parent=1 // pred_check_branch
      %44 = sbr.rel (0) target = $region37
    $region36: #{_lambda_.1} parent=1 // pred_region
      _
    $region37: #{_lambda_.1} parent=1 // pred_fallthru
      _
    // Predicated region
    $region38: #{_lambda_.1} parent=1 // pred_check
      _
    $region39: #{_lambda_.1} parent=1 // pred_check_branch
      %46 = sbr.rel (0) target = $region41
    $region40: #{_lambda_.1} parent=1 // pred_region
      _
    $region41: #{_lambda_.1} parent=1 // pred_fallthru
      _
    // Predicated region
    $region42: #{_lambda_.1} parent=1 // pred_check
      _
    $region43: #{_lambda_.1} parent=1 // pred_check_branch
      %48 = sbr.rel (0) target = $region45
    $region44: #{_lambda_.1} parent=1 // pred_region
      _
    $region45: #{_lambda_.1} parent=1 // pred_fallthru
      _
    // Predicated region
    $region46: #{_lambda_.1} parent=1 // pred_check
      _
    $region47: #{_lambda_.1} parent=1 // pred_check_branch
      %50 = sbr.rel (0) target = $region49
    $region48: #{_lambda_.1} parent=1 // pred_region
      _
    $region49: #{_lambda_.1} parent=1 // pred_fallthru
      _
    // Predicated region
    $region50: #{_lambda_.1} parent=1 // pred_check
      _
    $region51: #{_lambda_.1} parent=1 // pred_check_branch
      %52 = sbr.rel (0) target = $region53
    $region52: #{_lambda_.1} parent=1 // pred_region
      _
    $region53: #{_lambda_.1} parent=1 // pred_fallthru
      _
    // Predicated region
    $region54: #{_lambda_.1} parent=1 // pred_check
      _
    $region55: #{_lambda_.1} parent=1 // pred_check_branch
      %54 = sbr.rel (0) target = $region57
    $region56: #{_lambda_.1} parent=1 // pred_region
      _
    $region57: #{_lambda_.1} parent=1 // pred_fallthru
      _
    // Predicated region
    $region58: #{_lambda_.1} parent=1 // pred_check
      _
    $region59: #{_lambda_.1} parent=1 // pred_check_branch
      %56 = sbr.rel (0) target = $region61
    $region60: #{_lambda_.1} parent=1 // pred_region
      _
    $region61: #{_lambda_.1} parent=1 // pred_fallthru
      _
    // Predicated region
    $region62: #{_lambda_.1} parent=1 // pred_check
      _
    $region63: #{_lambda_.1} parent=1 // pred_check_branch
      %58 = sbr.rel (0) target = $region65
    $region64: #{_lambda_.1} parent=1 // pred_region
      _
    $region65: #{_lambda_.1} parent=1 // pred_fallthru
      _
    // Predicated region
    $region66: #{_lambda_.1} parent=1 // pred_check
      _
    $region67: #{_lambda_.1} parent=1 // pred_check_branch
      %60 = sbr.rel (0) target = $region69
    $region68: #{_lambda_.1} parent=1 // pred_region
      _
    $region69: #{_lambda_.1} parent=1 // pred_fallthru
      _
    %v61 = vld [vmem:[%s0] sm:$0xff]
    %v62 = vld [vmem:[%s1] sm:$0xff]
    %v63 = vld [vmem:[%s1 + $0x8] sm:$0xff]
    %v64 = vld [vmem:[%s1 + $0x10] sm:$0xff]
    %v65 = vld [vmem:[%s1 + $0x18] sm:$0xff]
    %v66 = vld [vmem:[%s1 + $0x20] sm:$0xff]
    %v67 = vld [vmem:[%s1 + $0x28] sm:$0xff]
    %v68 = vld [vmem:[%s1 + $0x30] sm:$0xff]
    %v69 = vld [vmem:[%s1 + $0x38] sm:$0xff]
    %v70 = vld [vmem:[%s1 + $0x40] sm:$0xff]
    %v71 = vld [vmem:[%s1 + $0x48] sm:$0xff]
    %v72 = vld [vmem:[%s1 + $0x50] sm:$0xff]
    %v73 = vld [vmem:[%s1 + $0x58] sm:$0xff]
    %v74 = vld [vmem:[%s1 + $0x60] sm:$0xff]
    %v75 = vld [vmem:[%s1 + $0x68] sm:$0xff]
    %v76 = vld [vmem:[%s1 + $0x70] sm:$0xff]
    %v77 = vld [vmem:[%s1 + $0x78] sm:$0xff]
    %v78 = vld [vmem:[%s2] sm:$0x1]
    %v80 = vlaneseq
    %v81 = vshrl.u32 %v80, 7
    %v82 = vsub.s32 0, %v81
    %v83 = vrot.slane %v78, %v82
    %85 = vmatprep.subr.mxu0 0.0
    %86 = vmatpush1.msra.mxu0 %v62
    %87 = vmatprep.subr.mxu0 0.0
    %88 = vmatpush1.msra.mxu0 %v63
    %89 = vmatprep.subr.mxu0 0.0
    %90 = vmatpush1.msra.mxu0 %v64
    %91 = vmatprep.subr.mxu0 0.0
    %92 = vmatpush1.msra.mxu0 %v65
    %93 = vmatprep.subr.mxu0 0.0
    %94 = vmatpush1.msra.mxu0 %v66
    %95 = vmatprep.subr.mxu0 0.0
    %96 = vmatpush1.msra.mxu0 %v67
    %97 = vmatprep.subr.mxu0 0.0
    %98 = vmatpush1.msra.mxu0 %v68
    %99 = vmatprep.subr.mxu0 0.0
    %100 = vmatpush1.msra.mxu0 %v69
    %101 = vmatprep.subr.mxu0 0.0
    %102 = vmatpush1.msra.mxu0 %v70
    %103 = vmatprep.subr.mxu0 0.0
    %104 = vmatpush1.msra.mxu0 %v71
    %105 = vmatprep.subr.mxu0 0.0
    %106 = vmatpush1.msra.mxu0 %v72
    %107 = vmatprep.subr.mxu0 0.0
    %108 = vmatpush1.msra.mxu0 %v73
    %109 = vmatprep.subr.mxu0 0.0
    %110 = vmatpush1.msra.mxu0 %v74
    %111 = vmatprep.subr.mxu0 0.0
    %112 = vmatpush1.msra.mxu0 %v75
    %113 = vmatprep.subr.mxu0 0.0
    %114 = vmatpush1.msra.mxu0 %v76
    %115 = vmatprep.subr.mxu0 0.0
    %116 = vmatpush1.msra.mxu0 %v77
    %117 = vmatprep.subr.mxu0 0.0
    %118 = vmatpush1.msra.mxu0 0.0
    %119 = vmatprep.subr.mxu0 0.0
    %120 = vmatpush1.msra.mxu0 0.0
    %121 = vmatprep.subr.mxu0 0.0
    %122 = vmatpush1.msra.mxu0 0.0
    %123 = vmatprep.subr.mxu0 0.0
    %124 = vmatpush1.msra.mxu0 0.0
    %125 = vmatprep.subr.mxu0 0.0
    %126 = vmatpush1.msra.mxu0 0.0
    %127 = vmatprep.subr.mxu0 0.0
    %128 = vmatpush1.msra.mxu0 0.0
    %129 = vmatprep.subr.mxu0 0.0
    %130 = vmatpush1.msra.mxu0 0.0
    %131 = vmatprep.subr.mxu0 0.0
    %132 = vmatpush1.msra.mxu0 0.0
    %133 = vmatprep.subr.mxu0 0.0
    %134 = vmatpush1.msra.mxu0 0.0
    %135 = vmatprep.subr.mxu0 0.0
    %136 = vmatpush1.msra.mxu0 0.0
    %137 = vmatprep.subr.mxu0 0.0
    %138 = vmatpush1.msra.mxu0 0.0
    %139 = vmatprep.subr.mxu0 0.0
    %140 = vmatpush1.msra.mxu0 0.0
    %141 = vmatprep.subr.mxu0 0.0
    %142 = vmatpush1.msra.mxu0 0.0
    %143 = vmatprep.subr.mxu0 0.0
    %144 = vmatpush1.msra.mxu0 0.0
    %145 = vmatprep.subr.mxu0 0.0
    %146 = vmatpush1.msra.mxu0 0.0
    %147 = vmatprep.subr.mxu0 0.0
    %148 = vmatpush1.msra.mxu0 0.0
    %149 = vmatprep.mubr.f32.mxu0 0.0
    %150 = vmatmul.mubr.f32.gmra.mrb[0].mxu0 %v61
    %v151 = vpop.f32.mrb[0].mxu0
    %v152 = vadd.f32 %v83, %v151
    %v153 = vpop.f32.mrb[0].mxu0
    %154 = vdwg.mxu0
    %v155 = vmax.f32 %v152, 0.0
    %v156 = vld [vmem:[%s3] sm:$0xff]
    %v157 = vld [vmem:[%s3 + $0x8] sm:$0xff]
    %v158 = vld [vmem:[%s3 + $0x10] sm:$0xff]
    %v159 = vld [vmem:[%s3 + $0x18] sm:$0xff]
    %v160 = vld [vmem:[%s3 + $0x20] sm:$0xff]
    %v161 = vld [vmem:[%s3 + $0x28] sm:$0xff]
    %v162 = vld [vmem:[%s3 + $0x30] sm:$0xff]
    %v163 = vld [vmem:[%s3 + $0x38] sm:$0xff]
    %v164 = vld [vmem:[%s4] sm:$0x1]
    %v166 = vlaneseq
    %v167 = vshrl.u32 %v166, 7
    %v168 = vsub.s32 0, %v167
    %v169 = vrot.slane %v164, %v168
    %vm171 = vcmask 523264
    %v173 = vsel %vm171, %v155, 0
    %175 = vmatprep.subr.mxu0 0.0
    %176 = vmatpush1.msra.mxu0 %v156
    %177 = vmatprep.subr.mxu0 0.0
    %178 = vmatpush1.msra.mxu0 %v157
    %179 = vmatprep.subr.mxu0 0.0
    %180 = vmatpush1.msra.mxu0 %v158
    %181 = vmatprep.subr.mxu0 0.0
    %182 = vmatpush1.msra.mxu0 %v159
    %183 = vmatprep.subr.mxu0 0.0
    %184 = vmatpush1.msra.mxu0 %v160
    %185 = vmatprep.subr.mxu0 0.0
    %186 = vmatpush1.msra.mxu0 %v161
    %187 = vmatprep.subr.mxu0 0.0
    %188 = vmatpush1.msra.mxu0 %v162
    %189 = vmatprep.subr.mxu0 0.0
    %190 = vmatpush1.msra.mxu0 %v163
    %191 = vmatprep.subr.mxu0 0.0
    %192 = vmatpush1.msra.mxu0 0.0
    %193 = vmatprep.subr.mxu0 0.0
    %194 = vmatpush1.msra.mxu0 0.0
    %195 = vmatprep.subr.mxu0 0.0
    %196 = vmatpush1.msra.mxu0 0.0
    %197 = vmatprep.subr.mxu0 0.0
    %198 = vmatpush1.msra.mxu0 0.0
    %199 = vmatprep.subr.mxu0 0.0
    %200 = vmatpush1.msra.mxu0 0.0
    %201 = vmatprep.subr.mxu0 0.0
    %202 = vmatpush1.msra.mxu0 0.0
    %203 = vmatprep.subr.mxu0 0.0
    %204 = vmatpush1.msra.mxu0 0.0
    %205 = vmatprep.subr.mxu0 0.0
    %206 = vmatpush1.msra.mxu0 0.0
    %207 = vmatprep.subr.mxu0 0.0
    %208 = vmatpush1.msra.mxu0 0.0
    %209 = vmatprep.subr.mxu0 0.0
    %210 = vmatpush1.msra.mxu0 0.0
    %211 = vmatprep.subr.mxu0 0.0
    %212 = vmatpush1.msra.mxu0 0.0
    %213 = vmatprep.subr.mxu0 0.0
    %214 = vmatpush1.msra.mxu0 0.0
    %215 = vmatprep.subr.mxu0 0.0
    %216 = vmatpush1.msra.mxu0 0.0
    %217 = vmatprep.subr.mxu0 0.0
    %218 = vmatpush1.msra.mxu0 0.0
    %219 = vmatprep.subr.mxu0 0.0
    %220 = vmatpush1.msra.mxu0 0.0
    %221 = vmatprep.subr.mxu0 0.0
    %222 = vmatpush1.msra.mxu0 0.0
    %223 = vmatprep.subr.mxu0 0.0
    %224 = vmatpush1.msra.mxu0 0.0
    %225 = vmatprep.subr.mxu0 0.0
    %226 = vmatpush1.msra.mxu0 0.0
    %227 = vmatprep.subr.mxu0 0.0
    %228 = vmatpush1.msra.mxu0 0.0
    %229 = vmatprep.subr.mxu0 0.0
    %230 = vmatpush1.msra.mxu0 0.0
    %231 = vmatprep.subr.mxu0 0.0
    %232 = vmatpush1.msra.mxu0 0.0
    %233 = vmatprep.subr.mxu0 0.0
    %234 = vmatpush1.msra.mxu0 0.0
    %235 = vmatprep.subr.mxu0 0.0
    %236 = vmatpush1.msra.mxu0 0.0
    %237 = vmatprep.subr.mxu0 0.0
    %238 = vmatpush1.msra.mxu0 0.0
    %239 = vmatprep.mubr.f32.mxu0 0.0
    %240 = vmatmul.mubr.f32.gmra.mrb[0].mxu0 %v173
    %v241 = vpop.f32.mrb[0].mxu0
    %v242 = vadd.f32 %v169, %v241
    %v243 = vpop.f32.mrb[0].mxu0
    %244 = vdwg.mxu0
    %v245 = vmax.f32 %v242, 0.0
    %v246 = vld [vmem:[%s5] sm:$0xff]
    %v247 = vld [vmem:[%s5 + $0x8] sm:$0xff]
    %v248 = vld [vmem:[%s5 + $0x10] sm:$0xff]
    %v249 = vld [vmem:[%s5 + $0x18] sm:$0xff]
    %v250 = vld [vmem:[%s6] sm:$0x1]
    %v252 = vlaneseq
    %v253 = vshrl.u32 %v252, 7
    %v254 = vsub.s32 0, %v253
    %v255 = vrot.slane %v250, %v254
    %vm257 = vcmask 261120
    %v259 = vsel %vm257, %v245, 0
    %261 = vmatprep.subr.mxu0 0.0
    %262 = vmatpush1.msra.mxu0 %v246
    %263 = vmatprep.subr.mxu0 0.0
    %264 = vmatpush1.msra.mxu0 %v247
    %265 = vmatprep.subr.mxu0 0.0
    %266 = vmatpush1.msra.mxu0 %v248
    %267 = vmatprep.subr.mxu0 0.0
    %268 = vmatpush1.msra.mxu0 %v249
    %269 = vmatprep.subr.mxu0 0.0
    %270 = vmatpush1.msra.mxu0 0.0
    %271 = vmatprep.subr.mxu0 0.0
    %272 = vmatpush1.msra.mxu0 0.0
    %273 = vmatprep.subr.mxu0 0.0
    %274 = vmatpush1.msra.mxu0 0.0
    %275 = vmatprep.subr.mxu0 0.0
    %276 = vmatpush1.msra.mxu0 0.0
    %277 = vmatprep.subr.mxu0 0.0
    %278 = vmatpush1.msra.mxu0 0.0
    %279 = vmatprep.subr.mxu0 0.0
    %280 = vmatpush1.msra.mxu0 0.0
    %281 = vmatprep.subr.mxu0 0.0
    %282 = vmatpush1.msra.mxu0 0.0
    %283 = vmatprep.subr.mxu0 0.0
    %284 = vmatpush1.msra.mxu0 0.0
    %285 = vmatprep.subr.mxu0 0.0
    %286 = vmatpush1.msra.mxu0 0.0
    %287 = vmatprep.subr.mxu0 0.0
    %288 = vmatpush1.msra.mxu0 0.0
    %289 = vmatprep.subr.mxu0 0.0
    %290 = vmatpush1.msra.mxu0 0.0
    %291 = vmatprep.subr.mxu0 0.0
    %292 = vmatpush1.msra.mxu0 0.0
    %293 = vmatprep.subr.mxu0 0.0
    %294 = vmatpush1.msra.mxu0 0.0
    %295 = vmatprep.subr.mxu0 0.0
    %296 = vmatpush1.msra.mxu0 0.0
    %297 = vmatprep.subr.mxu0 0.0
    %298 = vmatpush1.msra.mxu0 0.0
    %299 = vmatprep.subr.mxu0 0.0
    %300 = vmatpush1.msra.mxu0 0.0
    %301 = vmatprep.subr.mxu0 0.0
    %302 = vmatpush1.msra.mxu0 0.0
    %303 = vmatprep.subr.mxu0 0.0
    %304 = vmatpush1.msra.mxu0 0.0
    %305 = vmatprep.subr.mxu0 0.0
    %306 = vmatpush1.msra.mxu0 0.0
    %307 = vmatprep.subr.mxu0 0.0
    %308 = vmatpush1.msra.mxu0 0.0
    %309 = vmatprep.subr.mxu0 0.0
    %310 = vmatpush1.msra.mxu0 0.0
    %311 = vmatprep.subr.mxu0 0.0
    %312 = vmatpush1.msra.mxu0 0.0
    %313 = vmatprep.subr.mxu0 0.0
    %314 = vmatpush1.msra.mxu0 0.0
    %315 = vmatprep.subr.mxu0 0.0
    %316 = vmatpush1.msra.mxu0 0.0
    %317 = vmatprep.subr.mxu0 0.0
    %318 = vmatpush1.msra.mxu0 0.0
    %319 = vmatprep.subr.mxu0 0.0
    %320 = vmatpush1.msra.mxu0 0.0
    %321 = vmatprep.subr.mxu0 0.0
    %322 = vmatpush1.msra.mxu0 0.0
    %323 = vmatprep.subr.mxu0 0.0
    %324 = vmatpush1.msra.mxu0 0.0
    %325 = vmatprep.mubr.f32.mxu0 0.0
    %326 = vmatmul.mubr.f32.gmra.mrb[0].mxu0 %v259
    %v327 = vpop.f32.mrb[0].mxu0
    %v328 = vadd.f32 %v255, %v327
    %v329 = vpop.f32.mrb[0].mxu0
    %330 = vdwg.mxu0
    %v331 = vmax.f32 %v328, 0.0
    %v332 = vld [vmem:[%s7] sm:$0xff]
    %v333 = vld [vmem:[%s7 + $0x8] sm:$0xff]
    %v334 = vld [vmem:[%s8] sm:$0x1]
    %v336 = vlaneseq
    %v337 = vshrl.u32 %v336, 7
    %v338 = vsub.s32 0, %v337
    %v339 = vrot.slane %v334, %v338
    %vm341 = vcmask 130048
    %v343 = vsel %vm341, %v331, 0
    %345 = vmatprep.subr.mxu0 0.0
    %346 = vmatpush1.msra.mxu0 %v332
    %347 = vmatprep.subr.mxu0 0.0
    %348 = vmatpush1.msra.mxu0 %v333
    %349 = vmatprep.subr.mxu0 0.0
    %350 = vmatpush1.msra.mxu0 0.0
    %351 = vmatprep.subr.mxu0 0.0
    %352 = vmatpush1.msra.mxu0 0.0
    %353 = vmatprep.subr.mxu0 0.0
    %354 = vmatpush1.msra.mxu0 0.0
    %355 = vmatprep.subr.mxu0 0.0
    %356 = vmatpush1.msra.mxu0 0.0
    %357 = vmatprep.subr.mxu0 0.0
    %358 = vmatpush1.msra.mxu0 0.0
    %359 = vmatprep.subr.mxu0 0.0
    %360 = vmatpush1.msra.mxu0 0.0
    %361 = vmatprep.subr.mxu0 0.0
    %362 = vmatpush1.msra.mxu0 0.0
    %363 = vmatprep.subr.mxu0 0.0
    %364 = vmatpush1.msra.mxu0 0.0
    %365 = vmatprep.subr.mxu0 0.0
    %366 = vmatpush1.msra.mxu0 0.0
    %367 = vmatprep.subr.mxu0 0.0
    %368 = vmatpush1.msra.mxu0 0.0
    %369 = vmatprep.subr.mxu0 0.0
    %370 = vmatpush1.msra.mxu0 0.0
    %371 = vmatprep.subr.mxu0 0.0
    %372 = vmatpush1.msra.mxu0 0.0
    %373 = vmatprep.subr.mxu0 0.0
    %374 = vmatpush1.msra.mxu0 0.0
    %375 = vmatprep.subr.mxu0 0.0
    %376 = vmatpush1.msra.mxu0 0.0
    %377 = vmatprep.subr.mxu0 0.0
    %378 = vmatpush1.msra.mxu0 0.0
    %379 = vmatprep.subr.mxu0 0.0
    %380 = vmatpush1.msra.mxu0 0.0
    %381 = vmatprep.subr.mxu0 0.0
    %382 = vmatpush1.msra.mxu0 0.0
    %383 = vmatprep.subr.mxu0 0.0
    %384 = vmatpush1.msra.mxu0 0.0
    %385 = vmatprep.subr.mxu0 0.0
    %386 = vmatpush1.msra.mxu0 0.0
    %387 = vmatprep.subr.mxu0 0.0
    %388 = vmatpush1.msra.mxu0 0.0
    %389 = vmatprep.subr.mxu0 0.0
    %390 = vmatpush1.msra.mxu0 0.0
    %391 = vmatprep.subr.mxu0 0.0
    %392 = vmatpush1.msra.mxu0 0.0
    %393 = vmatprep.subr.mxu0 0.0
    %394 = vmatpush1.msra.mxu0 0.0
    %395 = vmatprep.subr.mxu0 0.0
    %396 = vmatpush1.msra.mxu0 0.0
    %397 = vmatprep.subr.mxu0 0.0
    %398 = vmatpush1.msra.mxu0 0.0
    %399 = vmatprep.subr.mxu0 0.0
    %400 = vmatpush1.msra.mxu0 0.0
    %401 = vmatprep.subr.mxu0 0.0
    %402 = vmatpush1.msra.mxu0 0.0
    %403 = vmatprep.subr.mxu0 0.0
    %404 = vmatpush1.msra.mxu0 0.0
    %405 = vmatprep.subr.mxu0 0.0
    %406 = vmatpush1.msra.mxu0 0.0
    %407 = vmatprep.subr.mxu0 0.0
    %408 = vmatpush1.msra.mxu0 0.0
    %409 = vmatprep.mubr.f32.mxu0 0.0
    %410 = vmatmul.mubr.f32.gmra.mrb[0].mxu0 %v343
    %v411 = vpop.f32.mrb[0].mxu0
    %v412 = vadd.f32 %v339, %v411
    %v413 = vpop.f32.mrb[0].mxu0
    %414 = vdwg.mxu0
    %v415 = vmax.f32 %v412, 0.0
    %v416 = vld [vmem:[%s9] sm:$0xff]
    %v417 = vld [vmem:[%s10] sm:$0x1]
    %v419 = vlaneseq
    %v420 = vshrl.u32 %v419, 7
    %v421 = vsub.s32 0, %v420
    %v422 = vrot.slane %v417, %v421
    %vm424 = vcmask 64512
    %v426 = vsel %vm424, %v415, 0
    %428 = vmatprep.subr.mxu0 0.0
    %429 = vmatpush1.msra.mxu0 %v416
    %430 = vmatprep.subr.mxu0 0.0
    %431 = vmatpush1.msra.mxu0 0.0
    %432 = vmatprep.subr.mxu0 0.0
    %433 = vmatpush1.msra.mxu0 0.0
    %434 = vmatprep.subr.mxu0 0.0
    %435 = vmatpush1.msra.mxu0 0.0
    %436 = vmatprep.subr.mxu0 0.0
    %437 = vmatpush1.msra.mxu0 0.0
    %438 = vmatprep.subr.mxu0 0.0
    %439 = vmatpush1.msra.mxu0 0.0
    %440 = vmatprep.subr.mxu0 0.0
    %441 = vmatpush1.msra.mxu0 0.0
    %442 = vmatprep.subr.mxu0 0.0
    %443 = vmatpush1.msra.mxu0 0.0
    %444 = vmatprep.subr.mxu0 0.0
    %445 = vmatpush1.msra.mxu0 0.0
    %446 = vmatprep.subr.mxu0 0.0
    %447 = vmatpush1.msra.mxu0 0.0
    %448 = vmatprep.subr.mxu0 0.0
    %449 = vmatpush1.msra.mxu0 0.0
    %450 = vmatprep.subr.mxu0 0.0
    %451 = vmatpush1.msra.mxu0 0.0
    %452 = vmatprep.subr.mxu0 0.0
    %453 = vmatpush1.msra.mxu0 0.0
    %454 = vmatprep.subr.mxu0 0.0
    %455 = vmatpush1.msra.mxu0 0.0
    %456 = vmatprep.subr.mxu0 0.0
    %457 = vmatpush1.msra.mxu0 0.0
    %458 = vmatprep.subr.mxu0 0.0
    %459 = vmatpush1.msra.mxu0 0.0
    %460 = vmatprep.subr.mxu0 0.0
    %461 = vmatpush1.msra.mxu0 0.0
    %462 = vmatprep.subr.mxu0 0.0
    %463 = vmatpush1.msra.mxu0 0.0
    %464 = vmatprep.subr.mxu0 0.0
    %465 = vmatpush1.msra.mxu0 0.0
    %466 = vmatprep.subr.mxu0 0.0
    %467 = vmatpush1.msra.mxu0 0.0
    %468 = vmatprep.subr.mxu0 0.0
    %469 = vmatpush1.msra.mxu0 0.0
    %470 = vmatprep.subr.mxu0 0.0
    %471 = vmatpush1.msra.mxu0 0.0
    %472 = vmatprep.subr.mxu0 0.0
    %473 = vmatpush1.msra.mxu0 0.0
    %474 = vmatprep.subr.mxu0 0.0
    %475 = vmatpush1.msra.mxu0 0.0
    %476 = vmatprep.subr.mxu0 0.0
    %477 = vmatpush1.msra.mxu0 0.0
    %478 = vmatprep.subr.mxu0 0.0
    %479 = vmatpush1.msra.mxu0 0.0
    %480 = vmatprep.subr.mxu0 0.0
    %481 = vmatpush1.msra.mxu0 0.0
    %482 = vmatprep.subr.mxu0 0.0
    %483 = vmatpush1.msra.mxu0 0.0
    %484 = vmatprep.subr.mxu0 0.0
    %485 = vmatpush1.msra.mxu0 0.0
    %486 = vmatprep.subr.mxu0 0.0
    %487 = vmatpush1.msra.mxu0 0.0
    %488 = vmatprep.subr.mxu0 0.0
    %489 = vmatpush1.msra.mxu0 0.0
    %490 = vmatprep.subr.mxu0 0.0
    %491 = vmatpush1.msra.mxu0 0.0
    %492 = vmatprep.mubr.f32.mxu0 0.0
    %493 = vmatmul.mubr.f32.gmra.mrb[0].mxu0 %v426
    %v494 = vpop.f32.mrb[0].mxu0
    %v495 = vadd.f32 %v422, %v494
    %v496 = vpop.f32.mrb[0].mxu0
    %497 = vdwg.mxu0
    %v498 = vmax.f32 %v495, 0.0
    %v499 = vld [vmem:[%s11] sm:$0xff]
    %v500 = vld [vmem:[%s11 + $0x8] sm:$0xff]
    %v501 = vld [vmem:[%s12] sm:$0x1]
    %v503 = vlaneseq
    %v504 = vshrl.u32 %v503, 7
    %v505 = vsub.s32 0, %v504
    %v506 = vrot.slane %v501, %v505
    %v509 = vsel %vm341, %v498, 0
    %511 = vmatprep.subr.mxu0 0.0
    %512 = vmatpush1.msra.mxu0 %v499
    %513 = vmatprep.subr.mxu0 0.0
    %514 = vmatpush1.msra.mxu0 %v500
    %515 = vmatprep.subr.mxu0 0.0
    %516 = vmatpush1.msra.mxu0 0.0
    %517 = vmatprep.subr.mxu0 0.0
    %518 = vmatpush1.msra.mxu0 0.0
    %519 = vmatprep.subr.mxu0 0.0
    %520 = vmatpush1.msra.mxu0 0.0
    %521 = vmatprep.subr.mxu0 0.0
    %522 = vmatpush1.msra.mxu0 0.0
    %523 = vmatprep.subr.mxu0 0.0
    %524 = vmatpush1.msra.mxu0 0.0
    %525 = vmatprep.subr.mxu0 0.0
    %526 = vmatpush1.msra.mxu0 0.0
    %527 = vmatprep.subr.mxu0 0.0
    %528 = vmatpush1.msra.mxu0 0.0
    %529 = vmatprep.subr.mxu0 0.0
    %530 = vmatpush1.msra.mxu0 0.0
    %531 = vmatprep.subr.mxu0 0.0
    %532 = vmatpush1.msra.mxu0 0.0
    %533 = vmatprep.subr.mxu0 0.0
    %534 = vmatpush1.msra.mxu0 0.0
    %535 = vmatprep.subr.mxu0 0.0
    %536 = vmatpush1.msra.mxu0 0.0
    %537 = vmatprep.subr.mxu0 0.0
    %538 = vmatpush1.msra.mxu0 0.0
    %539 = vmatprep.subr.mxu0 0.0
    %540 = vmatpush1.msra.mxu0 0.0
    %541 = vmatprep.subr.mxu0 0.0
    %542 = vmatpush1.msra.mxu0 0.0
    %543 = vmatprep.subr.mxu0 0.0
    %544 = vmatpush1.msra.mxu0 0.0
    %545 = vmatprep.subr.mxu0 0.0
    %546 = vmatpush1.msra.mxu0 0.0
    %547 = vmatprep.subr.mxu0 0.0
    %548 = vmatpush1.msra.mxu0 0.0
    %549 = vmatprep.subr.mxu0 0.0
    %550 = vmatpush1.msra.mxu0 0.0
    %551 = vmatprep.subr.mxu0 0.0
    %552 = vmatpush1.msra.mxu0 0.0
    %553 = vmatprep.subr.mxu0 0.0
    %554 = vmatpush1.msra.mxu0 0.0
    %555 = vmatprep.subr.mxu0 0.0
    %556 = vmatpush1.msra.mxu0 0.0
    %557 = vmatprep.subr.mxu0 0.0
    %558 = vmatpush1.msra.mxu0 0.0
    %559 = vmatprep.subr.mxu0 0.0
    %560 = vmatpush1.msra.mxu0 0.0
    %561 = vmatprep.subr.mxu0 0.0
    %562 = vmatpush1.msra.mxu0 0.0
    %563 = vmatprep.subr.mxu0 0.0
    %564 = vmatpush1.msra.mxu0 0.0
    %565 = vmatprep.subr.mxu0 0.0
    %566 = vmatpush1.msra.mxu0 0.0
    %567 = vmatprep.subr.mxu0 0.0
    %568 = vmatpush1.msra.mxu0 0.0
    %569 = vmatprep.subr.mxu0 0.0
    %570 = vmatpush1.msra.mxu0 0.0
    %571 = vmatprep.subr.mxu0 0.0
    %572 = vmatpush1.msra.mxu0 0.0
    %573 = vmatprep.subr.mxu0 0.0
    %574 = vmatpush1.msra.mxu0 0.0
    %575 = vmatprep.mubr.f32.mxu0 0.0
    %576 = vmatmul.mubr.f32.gmra.mrb[0].mxu0 %v509
    %v577 = vpop.f32.mrb[0].mxu0
    %v578 = vadd.f32 %v506, %v577
    %v579 = vpop.f32.mrb[0].mxu0
    %580 = vdwg.mxu0
    %v581 = vmax.f32 %v578, 0.0
    %v582 = vld [vmem:[%s13] sm:$0xff]
    %v583 = vld [vmem:[%s13 + $0x8] sm:$0xff]
    %v584 = vld [vmem:[%s13 + $0x10] sm:$0xff]
    %v585 = vld [vmem:[%s13 + $0x18] sm:$0xff]
    %v586 = vld [vmem:[%s14] sm:$0x1]
    %v588 = vlaneseq
    %v589 = vshrl.u32 %v588, 7
    %v590 = vsub.s32 0, %v589
    %v591 = vrot.slane %v586, %v590
    %v594 = vsel %vm257, %v581, 0
    %596 = vmatprep.subr.mxu0 0.0
    %597 = vmatpush1.msra.mxu0 %v582
    %598 = vmatprep.subr.mxu0 0.0
    %599 = vmatpush1.msra.mxu0 %v583
    %600 = vmatprep.subr.mxu0 0.0
    %601 = vmatpush1.msra.mxu0 %v584
    %602 = vmatprep.subr.mxu0 0.0
    %603 = vmatpush1.msra.mxu0 %v585
    %604 = vmatprep.subr.mxu0 0.0
    %605 = vmatpush1.msra.mxu0 0.0
    %606 = vmatprep.subr.mxu0 0.0
    %607 = vmatpush1.msra.mxu0 0.0
    %608 = vmatprep.subr.mxu0 0.0
    %609 = vmatpush1.msra.mxu0 0.0
    %610 = vmatprep.subr.mxu0 0.0
    %611 = vmatpush1.msra.mxu0 0.0
    %612 = vmatprep.subr.mxu0 0.0
    %613 = vmatpush1.msra.mxu0 0.0
    %614 = vmatprep.subr.mxu0 0.0
    %615 = vmatpush1.msra.mxu0 0.0
    %616 = vmatprep.subr.mxu0 0.0
    %617 = vmatpush1.msra.mxu0 0.0
    %618 = vmatprep.subr.mxu0 0.0
    %619 = vmatpush1.msra.mxu0 0.0
    %620 = vmatprep.subr.mxu0 0.0
    %621 = vmatpush1.msra.mxu0 0.0
    %622 = vmatprep.subr.mxu0 0.0
    %623 = vmatpush1.msra.mxu0 0.0
    %624 = vmatprep.subr.mxu0 0.0
    %625 = vmatpush1.msra.mxu0 0.0
    %626 = vmatprep.subr.mxu0 0.0
    %627 = vmatpush1.msra.mxu0 0.0
    %628 = vmatprep.subr.mxu0 0.0
    %629 = vmatpush1.msra.mxu0 0.0
    %630 = vmatprep.subr.mxu0 0.0
    %631 = vmatpush1.msra.mxu0 0.0
    %632 = vmatprep.subr.mxu0 0.0
    %633 = vmatpush1.msra.mxu0 0.0
    %634 = vmatprep.subr.mxu0 0.0
    %635 = vmatpush1.msra.mxu0 0.0
    %636 = vmatprep.subr.mxu0 0.0
    %637 = vmatpush1.msra.mxu0 0.0
    %638 = vmatprep.subr.mxu0 0.0
    %639 = vmatpush1.msra.mxu0 0.0
    %640 = vmatprep.subr.mxu0 0.0
    %641 = vmatpush1.msra.mxu0 0.0
    %642 = vmatprep.subr.mxu0 0.0
    %643 = vmatpush1.msra.mxu0 0.0
    %644 = vmatprep.subr.mxu0 0.0
    %645 = vmatpush1.msra.mxu0 0.0
    %646 = vmatprep.subr.mxu0 0.0
    %647 = vmatpush1.msra.mxu0 0.0
    %648 = vmatprep.subr.mxu0 0.0
    %649 = vmatpush1.msra.mxu0 0.0
    %650 = vmatprep.subr.mxu0 0.0
    %651 = vmatpush1.msra.mxu0 0.0
    %652 = vmatprep.subr.mxu0 0.0
    %653 = vmatpush1.msra.mxu0 0.0
    %654 = vmatprep.subr.mxu0 0.0
    %655 = vmatpush1.msra.mxu0 0.0
    %656 = vmatprep.subr.mxu0 0.0
    %657 = vmatpush1.msra.mxu0 0.0
    %658 = vmatprep.subr.mxu0 0.0
    %659 = vmatpush1.msra.mxu0 0.0
    %660 = vmatprep.mubr.f32.mxu0 0.0
    %661 = vmatmul.mubr.f32.gmra.mrb[0].mxu0 %v594
    %v662 = vpop.f32.mrb[0].mxu0
    %v663 = vadd.f32 %v591, %v662
    %v664 = vpop.f32.mrb[0].mxu0
    %665 = vdwg.mxu0
    %v666 = vmax.f32 %v663, 0.0
    %v667 = vld [vmem:[%s15] sm:$0xff]
    %v668 = vld [vmem:[%s15 + $0x8] sm:$0xff]
    %v669 = vld [vmem:[%s15 + $0x10] sm:$0xff]
    %v670 = vld [vmem:[%s15 + $0x18] sm:$0xff]
    %v671 = vld [vmem:[%s15 + $0x20] sm:$0xff]
    %v672 = vld [vmem:[%s15 + $0x28] sm:$0xff]
    %v673 = vld [vmem:[%s15 + $0x30] sm:$0xff]
    %v674 = vld [vmem:[%s15 + $0x38] sm:$0xff]
    %v675 = vld [vmem:[%s16] sm:$0x1]
    %v677 = vlaneseq
    %v678 = vshrl.u32 %v677, 7
    %v679 = vsub.s32 0, %v678
    %v680 = vrot.slane %v675, %v679
    %v683 = vsel %vm171, %v666, 0
    %685 = vmatprep.subr.mxu0 0.0
    %686 = vmatpush1.msra.mxu0 %v667
    %687 = vmatprep.subr.mxu0 0.0
    %688 = vmatpush1.msra.mxu0 %v668
    %689 = vmatprep.subr.mxu0 0.0
    %690 = vmatpush1.msra.mxu0 %v669
    %691 = vmatprep.subr.mxu0 0.0
    %692 = vmatpush1.msra.mxu0 %v670
    %693 = vmatprep.subr.mxu0 0.0
    %694 = vmatpush1.msra.mxu0 %v671
    %695 = vmatprep.subr.mxu0 0.0
    %696 = vmatpush1.msra.mxu0 %v672
    %697 = vmatprep.subr.mxu0 0.0
    %698 = vmatpush1.msra.mxu0 %v673
    %699 = vmatprep.subr.mxu0 0.0
    %700 = vmatpush1.msra.mxu0 %v674
    %701 = vmatprep.subr.mxu0 0.0
    %702 = vmatpush1.msra.mxu0 0.0
    %703 = vmatprep.subr.mxu0 0.0
    %704 = vmatpush1.msra.mxu0 0.0
    %705 = vmatprep.subr.mxu0 0.0
    %706 = vmatpush1.msra.mxu0 0.0
    %707 = vmatprep.subr.mxu0 0.0
    %708 = vmatpush1.msra.mxu0 0.0
    %709 = vmatprep.subr.mxu0 0.0
    %710 = vmatpush1.msra.mxu0 0.0
    %711 = vmatprep.subr.mxu0 0.0
    %712 = vmatpush1.msra.mxu0 0.0
    %713 = vmatprep.subr.mxu0 0.0
    %714 = vmatpush1.msra.mxu0 0.0
    %715 = vmatprep.subr.mxu0 0.0
    %716 = vmatpush1.msra.mxu0 0.0
    %717 = vmatprep.subr.mxu0 0.0
    %718 = vmatpush1.msra.mxu0 0.0
    %719 = vmatprep.subr.mxu0 0.0
    %720 = vmatpush1.msra.mxu0 0.0
    %721 = vmatprep.subr.mxu0 0.0
    %722 = vmatpush1.msra.mxu0 0.0
    %723 = vmatprep.subr.mxu0 0.0
    %724 = vmatpush1.msra.mxu0 0.0
    %725 = vmatprep.subr.mxu0 0.0
    %726 = vmatpush1.msra.mxu0 0.0
    %727 = vmatprep.subr.mxu0 0.0
    %728 = vmatpush1.msra.mxu0 0.0
    %729 = vmatprep.subr.mxu0 0.0
    %730 = vmatpush1.msra.mxu0 0.0
    %731 = vmatprep.subr.mxu0 0.0
    %732 = vmatpush1.msra.mxu0 0.0
    %733 = vmatprep.subr.mxu0 0.0
    %734 = vmatpush1.msra.mxu0 0.0
    %735 = vmatprep.subr.mxu0 0.0
    %736 = vmatpush1.msra.mxu0 0.0
    %737 = vmatprep.subr.mxu0 0.0
    %738 = vmatpush1.msra.mxu0 0.0
    %739 = vmatprep.subr.mxu0 0.0
    %740 = vmatpush1.msra.mxu0 0.0
    %741 = vmatprep.subr.mxu0 0.0
    %742 = vmatpush1.msra.mxu0 0.0
    %743 = vmatprep.subr.mxu0 0.0
    %744 = vmatpush1.msra.mxu0 0.0
    %745 = vmatprep.subr.mxu0 0.0
    %746 = vmatpush1.msra.mxu0 0.0
    %747 = vmatprep.subr.mxu0 0.0
    %748 = vmatpush1.msra.mxu0 0.0
    %749 = vmatprep.mubr.f32.mxu0 0.0
    %750 = vmatmul.mubr.f32.gmra.mrb[0].mxu0 %v683
    %v751 = vpop.f32.mrb[0].mxu0
    %v752 = vadd.f32 %v680, %v751
    %v753 = vpop.f32.mrb[0].mxu0
    %754 = vdwg.mxu0
    %v755 = vmax.f32 %v752, 0.0
    %v756 = vsel %vm424, %v415, inf
    %757 = vmin.xlane.f32.xlu0 %v756
    %v758 = vpop.xlane.xlu0 %757
    %v759 = vsel %vm424, %v415, -inf
    %760 = vmax.xlane.f32.xlu0 %v759
    %v761 = vpop.xlane.xlu0 %760
    %v762 = vsub.f32 %v761, %v758
    %vm763 = vcmp.eq.f32.partialorder %v762, 0.0
    %v764 = vsel %vm763, 1.0, %v762
    %v765 = vsub.f32 %v415, %v758
    %v766 = vmul.f32 %v765, 2.0
    %v767 = vrcp.pop %v764
    %v768 = vmul.f32 %v766, %v767
    %v769 = vsub.f32 %v768, 1.0
    %v770 = vmul.f32 %v769, %v769
    %v771 = vsub.f32 1.0, %v770
    %v772 = vmax.f32 %v771, 0.0
    %v773 = vmin.f32 %v772, 1.0
    %v774 = vrsqrt.pop %v773
    %v775 = vmul.f32 %v773, %v774
    %vm776 = vcmp.eq.f32.partialorder %v773, inf
    %v777 = vsel %vm776, %v773, %v775
    %vm778 = vcmp.eq.f32.partialorder %v773, 0.0
    %v779 = vand.u32 %v773, 2147483648
    %v780 = vsel %vm778, %v779, %v777
    %v781 = vlaneseq
    %v782 = vshrl.u32 %v781, 7
    %v783 = vsub.s32 0, %v782
    %v784 = vrot.slane %v769, %v783
    %786 = vbcast.lane.b32.xlu0 %v784, 256
    %v787 = vpop.permute.xlu0 %786
    %v788 = vlaneseq
    %v789 = vshrl.u32 %v788, 7
    %v790 = vsub.s32 1, %v789
    %v791 = vrot.slane %v769, %v790
    %793 = vbcast.lane.b32.xlu0 %v791, 256
    %v794 = vpop.permute.xlu0 %793
    %v795 = vlaneseq
    %v796 = vshrl.u32 %v795, 7
    %v797 = vsub.s32 2, %v796
    %v798 = vrot.slane %v769, %v797
    %800 = vbcast.lane.b32.xlu0 %v798, 256
    %v801 = vpop.permute.xlu0 %800
    %v802 = vlaneseq
    %v803 = vshrl.u32 %v802, 7
    %v804 = vsub.s32 3, %v803
    %v805 = vrot.slane %v769, %v804
    %807 = vbcast.lane.b32.xlu0 %v805, 256
    %v808 = vpop.permute.xlu0 %807
    %v809 = vlaneseq
    %v810 = vshrl.u32 %v809, 7
    %v811 = vsub.s32 4, %v810
    %v812 = vrot.slane %v769, %v811
    %814 = vbcast.lane.b32.xlu0 %v812, 256
    %v815 = vpop.permute.xlu0 %814
    %v816 = vlaneseq
    %v817 = vshrl.u32 %v816, 7
    %v818 = vsub.s32 5, %v817
    %v819 = vrot.slane %v769, %v818
    %821 = vbcast.lane.b32.xlu0 %v819, 256
    %v822 = vpop.permute.xlu0 %821
    %v823 = vlaneseq
    %v824 = vshrl.u32 %v823, 7
    %v825 = vsub.s32 6, %v824
    %v826 = vrot.slane %v769, %v825
    %828 = vbcast.lane.b32.xlu0 %v826, 256
    %v829 = vpop.permute.xlu0 %828
    %v830 = vlaneseq
    %v831 = vshrl.u32 %v830, 7
    %v832 = vsub.s32 7, %v831
    %v833 = vrot.slane %v769, %v832
    %835 = vbcast.lane.b32.xlu0 %v833, 256
    %v836 = vpop.permute.xlu0 %835
    %v838 = vcombine.high %v769, %v769
    %v840 = vunpack.c.l.s4 1966171168
    %v841 = vunpack.c.0.s8 %v840
    %v842 = vlaneseq
    %v843 = vshrl.u32 %v842, 7
    %v844 = vsub.s32 %v841, %v843
    %v845 = vrot.slane %v769, %v844
    %v847 = vunpack.c.l.s4 1966171168
    %v848 = vunpack.c.0.s8 %v847
    %v849 = vlaneseq
    %v850 = vshrl.u32 %v849, 7
    %v851 = vsub.s32 %v848, %v850
    %v852 = vrot.slane %v838, %v851
    %v853 = vcombine.high %v845, %v845
    %v854 = vcombine.high %v852, %v852
    %v856 = vunpack.c.l.s4 1966171168
    %v857 = vunpack.c.0.s8 %v856
    %v858 = vlaneseq
    %v859 = vshrl.u32 %v858, 7
    %v860 = vsub.s32 %v857, %v859
    %v861 = vrot.slane %v845, %v860
    %v863 = vunpack.c.l.s4 1966171168
    %v864 = vunpack.c.0.s8 %v863
    %v865 = vlaneseq
    %v866 = vshrl.u32 %v865, 7
    %v867 = vsub.s32 %v864, %v866
    %v868 = vrot.slane %v852, %v867
    %v870 = vunpack.c.l.s4 1966171168
    %v871 = vunpack.c.0.s8 %v870
    %v872 = vlaneseq
    %v873 = vshrl.u32 %v872, 7
    %v874 = vsub.s32 %v871, %v873
    %v875 = vrot.slane %v853, %v874
    %v877 = vunpack.c.l.s4 1966171168
    %v878 = vunpack.c.0.s8 %v877
    %v879 = vlaneseq
    %v880 = vshrl.u32 %v879, 7
    %v881 = vsub.s32 %v878, %v880
    %v882 = vrot.slane %v854, %v881
    %v883 = vcombine.high %v861, %v861
    %v884 = vcombine.high %v868, %v868
    %v885 = vcombine.high %v875, %v875
    %v886 = vcombine.high %v882, %v882
    %v887 = vlaneseq
    %v888 = vshrl.u32 %v887, 7
    %v889 = vsub.s32 0, %v888
    %v890 = vrot.slane %v861, %v889
    %v891 = vlaneseq
    %v892 = vshrl.u32 %v891, 7
    %v893 = vsub.s32 0, %v892
    %v894 = vrot.slane %v875, %v893
    %v895 = vlaneseq
    %v896 = vshrl.u32 %v895, 7
    %v897 = vsub.s32 0, %v896
    %v898 = vrot.slane %v883, %v897
    %v899 = vlaneseq
    %v900 = vshrl.u32 %v899, 7
    %v901 = vsub.s32 0, %v900
    %v902 = vrot.slane %v885, %v901
    %v903 = vlaneseq
    %v904 = vshrl.u32 %v903, 7
    %v905 = vsub.s32 0, %v904
    %v906 = vrot.slane %v868, %v905
    %v907 = vlaneseq
    %v908 = vshrl.u32 %v907, 7
    %v909 = vsub.s32 0, %v908
    %v910 = vrot.slane %v882, %v909
    %v911 = vlaneseq
    %v912 = vshrl.u32 %v911, 7
    %v913 = vsub.s32 0, %v912
    %v914 = vrot.slane %v884, %v913
    %v915 = vlaneseq
    %v916 = vshrl.u32 %v915, 7
    %v917 = vsub.s32 0, %v916
    %v918 = vrot.slane %v886, %v917
    %v927 = vmul.f32 %v787, %v890
    %v928 = vmul.f32 %v794, %v894
    %v929 = vmul.f32 %v801, %v898
    %v930 = vmul.f32 %v808, %v902
    %v931 = vmul.f32 %v815, %v906
    %v932 = vmul.f32 %v822, %v910
    %v933 = vmul.f32 %v829, %v914
    %v934 = vmul.f32 %v836, %v918
    %v935 = vlaneseq
    %v936 = vshrl.u32 %v935, 7
    %v937 = vsub.s32 0, %v936
    %v938 = vrot.slane %v780, %v937
    %940 = vbcast.lane.b32.xlu0 %v938, 256
    %v941 = vpop.permute.xlu0 %940
    %v942 = vlaneseq
    %v943 = vshrl.u32 %v942, 7
    %v944 = vsub.s32 1, %v943
    %v945 = vrot.slane %v780, %v944
    %947 = vbcast.lane.b32.xlu0 %v945, 256
    %v948 = vpop.permute.xlu0 %947
    %v949 = vlaneseq
    %v950 = vshrl.u32 %v949, 7
    %v951 = vsub.s32 2, %v950
    %v952 = vrot.slane %v780, %v951
    %954 = vbcast.lane.b32.xlu0 %v952, 256
    %v955 = vpop.permute.xlu0 %954
    %v956 = vlaneseq
    %v957 = vshrl.u32 %v956, 7
    %v958 = vsub.s32 3, %v957
    %v959 = vrot.slane %v780, %v958
    %961 = vbcast.lane.b32.xlu0 %v959, 256
    %v962 = vpop.permute.xlu0 %961
    %v963 = vlaneseq
    %v964 = vshrl.u32 %v963, 7
    %v965 = vsub.s32 4, %v964
    %v966 = vrot.slane %v780, %v965
    %968 = vbcast.lane.b32.xlu0 %v966, 256
    %v969 = vpop.permute.xlu0 %968
    %v970 = vlaneseq
    %v971 = vshrl.u32 %v970, 7
    %v972 = vsub.s32 5, %v971
    %v973 = vrot.slane %v780, %v972
    %975 = vbcast.lane.b32.xlu0 %v973, 256
    %v976 = vpop.permute.xlu0 %975
    %v977 = vlaneseq
    %v978 = vshrl.u32 %v977, 7
    %v979 = vsub.s32 6, %v978
    %v980 = vrot.slane %v780, %v979
    %982 = vbcast.lane.b32.xlu0 %v980, 256
    %v983 = vpop.permute.xlu0 %982
    %v984 = vlaneseq
    %v985 = vshrl.u32 %v984, 7
    %v986 = vsub.s32 7, %v985
    %v987 = vrot.slane %v780, %v986
    %989 = vbcast.lane.b32.xlu0 %v987, 256
    %v990 = vpop.permute.xlu0 %989
    %v992 = vcombine.high %v780, %v780
    %v994 = vunpack.c.l.s4 1966171168
    %v995 = vunpack.c.0.s8 %v994
    %v996 = vlaneseq
    %v997 = vshrl.u32 %v996, 7
    %v998 = vsub.s32 %v995, %v997
    %v999 = vrot.slane %v780, %v998
    %v1001 = vunpack.c.l.s4 1966171168
    %v1002 = vunpack.c.0.s8 %v1001
    %v1003 = vlaneseq
    %v1004 = vshrl.u32 %v1003, 7
    %v1005 = vsub.s32 %v1002, %v1004
    %v1006 = vrot.slane %v992, %v1005
    %v1007 = vcombine.high %v999, %v999
    %v1008 = vcombine.high %v1006, %v1006
    %v1010 = vunpack.c.l.s4 1966171168
    %v1011 = vunpack.c.0.s8 %v1010
    %v1012 = vlaneseq
    %v1013 = vshrl.u32 %v1012, 7
    %v1014 = vsub.s32 %v1011, %v1013
    %v1015 = vrot.slane %v999, %v1014
    %v1017 = vunpack.c.l.s4 1966171168
    %v1018 = vunpack.c.0.s8 %v1017
    %v1019 = vlaneseq
    %v1020 = vshrl.u32 %v1019, 7
    %v1021 = vsub.s32 %v1018, %v1020
    %v1022 = vrot.slane %v1006, %v1021
    %v1024 = vunpack.c.l.s4 1966171168
    %v1025 = vunpack.c.0.s8 %v1024
    %v1026 = vlaneseq
    %v1027 = vshrl.u32 %v1026, 7
    %v1028 = vsub.s32 %v1025, %v1027
    %v1029 = vrot.slane %v1007, %v1028
    %v1031 = vunpack.c.l.s4 1966171168
    %v1032 = vunpack.c.0.s8 %v1031
    %v1033 = vlaneseq
    %v1034 = vshrl.u32 %v1033, 7
    %v1035 = vsub.s32 %v1032, %v1034
    %v1036 = vrot.slane %v1008, %v1035
    %v1037 = vcombine.high %v1015, %v1015
    %v1038 = vcombine.high %v1022, %v1022
    %v1039 = vcombine.high %v1029, %v1029
    %v1040 = vcombine.high %v1036, %v1036
    %v1041 = vlaneseq
    %v1042 = vshrl.u32 %v1041, 7
    %v1043 = vsub.s32 0, %v1042
    %v1044 = vrot.slane %v1015, %v1043
    %v1045 = vlaneseq
    %v1046 = vshrl.u32 %v1045, 7
    %v1047 = vsub.s32 0, %v1046
    %v1048 = vrot.slane %v1029, %v1047
    %v1049 = vlaneseq
    %v1050 = vshrl.u32 %v1049, 7
    %v1051 = vsub.s32 0, %v1050
    %v1052 = vrot.slane %v1037, %v1051
    %v1053 = vlaneseq
    %v1054 = vshrl.u32 %v1053, 7
    %v1055 = vsub.s32 0, %v1054
    %v1056 = vrot.slane %v1039, %v1055
    %v1057 = vlaneseq
    %v1058 = vshrl.u32 %v1057, 7
    %v1059 = vsub.s32 0, %v1058
    %v1060 = vrot.slane %v1022, %v1059
    %v1061 = vlaneseq
    %v1062 = vshrl.u32 %v1061, 7
    %v1063 = vsub.s32 0, %v1062
    %v1064 = vrot.slane %v1036, %v1063
    %v1065 = vlaneseq
    %v1066 = vshrl.u32 %v1065, 7
    %v1067 = vsub.s32 0, %v1066
    %v1068 = vrot.slane %v1038, %v1067
    %v1069 = vlaneseq
    %v1070 = vshrl.u32 %v1069, 7
    %v1071 = vsub.s32 0, %v1070
    %v1072 = vrot.slane %v1040, %v1071
    %v1081 = vmul.f32 %v941, %v1044
    %v1082 = vmul.f32 %v948, %v1048
    %v1083 = vmul.f32 %v955, %v1052
    %v1084 = vmul.f32 %v962, %v1056
    %v1085 = vmul.f32 %v969, %v1060
    %v1086 = vmul.f32 %v976, %v1064
    %v1087 = vmul.f32 %v983, %v1068
    %v1088 = vmul.f32 %v990, %v1072
    %v1089 = vsub.f32 %v927, %v1081
    %v1090 = vsub.f32 %v928, %v1082
    %v1091 = vsub.f32 %v929, %v1083
    %v1092 = vsub.f32 %v930, %v1084
    %v1093 = vsub.f32 %v931, %v1085
    %v1094 = vsub.f32 %v932, %v1086
    %v1095 = vsub.f32 %v933, %v1087
    %v1096 = vsub.f32 %v934, %v1088
    %v1097 = vadd.f32 %v1089, %v1090
    %v1098 = vadd.f32 %v1097, %v1091
    %v1099 = vadd.f32 %v1098, %v1092
    %v1100 = vmul.f32 %v1099, 0.25
    %1101 = vst.msk [vmem:[#allocation2] sm:$0xff] %vm424, %v1100
    %v1102 = vadd.f32 %v1093, %v1094
    %v1103 = vadd.f32 %v1102, %v1095
    %v1104 = vadd.f32 %v1103, %v1096
    %v1105 = vmul.f32 %v1104, 0.25
    %s1106 = scalar_lea.vmem [#allocation2], 8
    %1107 = vst.msk [vmem:[%s1106] sm:$0xff] %vm424, %v1105
    %1108 = vst.msk [vmem:[#allocation4] sm:$0xff] %vm424, %v415
    %1109 = vst [vmem:[#allocation6] sm:$0xff] %v755
    // Predicated region
    $region70: #{_lambda_.1} parent=1 // pred_check
      _
    $region71: #{_lambda_.1} parent=1 // pred_check_branch
      %1111 = sbr.rel (0) target = $region73
    $region72: #{_lambda_.1} parent=1 // pred_region
      %s1113 = ssub.s32 256, 256
      %1114 = vsyncadd [#allocation3], %s1113
      %s1115 = sshll.u32 [#allocation2], 4
      %s1116 = int_to_ptr.vmem [resolvable:$true] %s1115
      %1121 = dma.vmem_to_hbm [thread:$0]  %s1116, 256, %s17, [#allocation3], 128, 128, 8
    $region73: #{_lambda_.1} parent=1 // pred_fallthru
      _
    // Predicated region
    $region74: #{_lambda_.1} parent=1 // pred_check
      _
    $region75: #{_lambda_.1} parent=1 // pred_check_branch
      %1123 = sbr.rel (0) target = $region77
    $region76: #{_lambda_.1} parent=1 // pred_region
      %s1125 = ssub.s32 128, 128
      %1126 = vsyncadd [#allocation5], %s1125
      %s1128 = sshll.u32 [#allocation4], 4
      %s1129 = int_to_ptr.vmem [resolvable:$true] %s1128
      %1131 = dma.vmem_to_hbm [thread:$0]  %s1129, 128, %s18, [#allocation5]
    $region77: #{_lambda_.1} parent=1 // pred_fallthru
      _
    // Predicated region
    $region78: #{_lambda_.1} parent=1 // pred_check
      _
    $region79: #{_lambda_.1} parent=1 // pred_check_branch
      %1133 = sbr.rel (0) target = $region81
    $region80: #{_lambda_.1} parent=1 // pred_region
      %s1135 = ssub.s32 128, 128
      %1136 = vsyncadd [#allocation5], %s1135
      %s1138 = sshll.u32 [#allocation6], 4
      %s1139 = int_to_ptr.vmem [resolvable:$true] %s1138
      %1141 = dma.vmem_to_hbm [thread:$0]  %s1139, 128, %s19, [#allocation5]
    $region81: #{_lambda_.1} parent=1 // pred_fallthru
      _
    // Predicated region
    $region82: #{_lambda_.1} parent=1 // pred_check
      _
    $region83: #{_lambda_.1} parent=1 // pred_check_branch
      %1143 = sbr.rel (0) target = $region85
    $region84: #{_lambda_.1} parent=1 // pred_region
      %1144 = dma.done [#allocation3], 256
    $region85: #{_lambda_.1} parent=1 // pred_fallthru
      _
    // Predicated region
    $region86: #{_lambda_.1} parent=1 // pred_check
      _
    $region87: #{_lambda_.1} parent=1 // pred_check_branch
      %1146 = sbr.rel (0) target = $region89
    $region88: #{_lambda_.1} parent=1 // pred_region
      %1147 = dma.done [#allocation5], 128
    $region89: #{_lambda_.1} parent=1 // pred_fallthru
      _
    // Predicated region
    $region90: #{_lambda_.1} parent=1 // pred_check
      _
    $region91: #{_lambda_.1} parent=1 // pred_check_branch
      %1149 = sbr.rel (0) target = $region93
    $region92: #{_lambda_.1} parent=1 // pred_region
      %1150 = dma.done [#allocation5], 128
    $region93: #{_lambda_.1} parent=1 // pred_fallthru
      _
    %1151 = vsyncpa [#allocation3], 1
    %1152 = vsyncpa [#allocation5], 1

</llo_original>
